<compile_context>
chip_gen: v5e
topology: v5e:2x2
jax: 0.10.0
libtpu: 0.0.40
codegen_flags: <defaults>
</compile_context>

<pallas_src>
import jax
import jax.numpy as jnp
from jax import lax
from jax.experimental import pallas as pl
from jax.experimental.pallas import tpu as pltpu

EPS = 1e-5
K = 3                      # kernel_size (padding=1 => 'same' convolution)
MXU_DTYPE = jnp.bfloat16   # MXU-input / inter-pass activation dtype


# ---------------------------------------------------------------------------
# wrapper-side helpers
# ---------------------------------------------------------------------------
def _banded_weight(w_hwio, W, dtype):
    """Fold a (3,3,Cin,Cout) conv weight into 3 banded matrices, one per dy.

    Wb[dy] has shape ((W+2)*Cin, W*Cout) so that
        out[h, w*Cout + co] = sum_dy (slab[dy:dy+H, :] @ Wb[dy])[h, w*Cout+co]
    is the 'same'-padded 3x3 convolution.  Rows are ordered to match the VMEM
    slab lane layout: interior pixels w = 0..W-1 first, then the left halo,
    then the right halo, so the per-step interior slab write starts at lane 0.
    """
    KH, KW, Cin, Cout = w_hwio.shape
    assert KH == K and KW == K
    eye = jnp.eye(W, dtype=jnp.float32)
    # P[dx, wp, w] = 1 iff padded column wp == w + dx.
    P = jnp.stack([jnp.pad(eye, ((dx, K - 1 - dx), (0, 0))) for dx in range(K)])
    # slab lane-block order: [wp = 1..W (interior), wp = 0, wp = W+1 (halos)]
    perm = jnp.array(list(range(1, W + 1)) + [0, W + 1])
    P = P[:, perm, :]
    t = jnp.einsum("xlw,yxio->yliwo", P, w_hwio.astype(jnp.float32))
    return t.reshape(K, (W + 2) * Cin, W * Cout).astype(dtype)


def _fold_bn(stats_cols, count, gamma, beta):
    """Combine per-(image, column) stats into whole-batch BN scale/shift.

    stats_cols: (N, 2, W*Cout); column j = w*Cout + c holds (mean, sum of
    squared deviations) over `count` (= H) elements.  Chan parallel-variance
    combine (all groups have equal counts -> exact) gives the biased batch
    variance nn.BatchNorm2d uses to normalize in training mode; gamma/beta
    are folded into per-channel scale/shift: y = x*s + t.
    """
    N, _, WC = stats_cols.shape
    Cout = gamma.shape[0]
    W = WC // Cout
    st = (stats_cols.reshape(N, 2, W, Cout)
          .transpose(0, 2, 1, 3).reshape(N * W, 2, Cout))
    m, ss = st[:, 0, :], st[:, 1, :]
    groups = N * W
    mean = jnp.mean(m, axis=0)
    var = (jnp.sum(ss, axis=0)
           + count * jnp.sum((m - mean) ** 2, axis=0)) / (groups * count)
    s = gamma * lax.rsqrt(var + EPS)
    t = beta - mean * s
    return s, t


# ---------------------------------------------------------------------------
# in-kernel helpers
# ---------------------------------------------------------------------------
def _row_slab_conv(slab_ref, w_ref, b_ref, H):
    """3x3 conv = 3 lane-dense row-slab matmuls (bf16 in, f32 accumulation)."""
    acc = b_ref[...]                                   # (1, W*Cout) f32 bias
    for dy in range(K):                                # static -> unrolled
        acc = acc + jnp.dot(slab_ref[dy:dy + H, :], w_ref[dy],
                            preferred_element_type=jnp.float32)
    return acc                                         # (H, W*Cout) f32


def _emit_stats(acc, st_ref):
    """Per-column (reduced over h) mean + sum of squared deviations (stable)."""
    m = jnp.mean(acc, axis=0, keepdims=True)
    st_ref[0:1, :] = m
    st_ref[1:2, :] = jnp.sum((acc - m) ** 2, axis=0, keepdims=True)


# ---------------------------------------------------------------------------
# pass 1: conv1 (3 banded matmuls) + per-image/column BN1 statistics
# ---------------------------------------------------------------------------
def _conv1_kernel(x_ref, w_ref, b_ref, z_ref, st_ref, slab_ref):
    H, Wc = x_ref.shape                                # (H, W*Cin)

    @pl.when(pl.program_id(0) == 0)                    # halo zeroed ONCE;
    def _zero_halo():                                  # scratch persists
        slab_ref[...] = jnp.zeros_like(slab_ref)       # across the grid

    # Interior write: lane-aligned (starts at lane 0), never touches the halo.
    slab_ref[1:H + 1, 0:Wc] = x_ref[...].astype(MXU_DTYPE)
    acc = _row_slab_conv(slab_ref, w_ref, b_ref, H)    # (H, W*Cout) f32
    z_ref[...] = acc.astype(z_ref.dtype)               # lane-dense bf16 store
    _emit_stats(acc, st_ref)


# ---------------------------------------------------------------------------
# pass 2: BN1 (folded scale/shift) + ReLU -> conv2 + BN2 statistics
# ---------------------------------------------------------------------------
def _conv2_kernel(z1_ref, s_ref, t_ref, w_ref, b_ref, z_ref, st_ref, slab_ref):
    H, Wc = z1_ref.shape                               # (H, W*Cout)

    @pl.when(pl.program_id(0) == 0)
    def _zero_halo():
        slab_ref[...] = jnp.zeros_like(slab_ref)

    # BN1 folded into per-channel scale/shift (pre-tiled to lane order) + ReLU.
    y = jnp.maximum(z1_ref[...].astype(jnp.float32) * s_ref[...] + t_ref[...],
                    0.0)
    slab_ref[1:H + 1, 0:Wc] = y.astype(MXU_DTYPE)
    acc = _row_slab_conv(slab_ref, w_ref, b_ref, H)    # (H, W*Cout) f32
    z_ref[...] = acc.astype(z_ref.dtype)
    _emit_stats(acc, st_ref)


# ---------------------------------------------------------------------------
# full forward pass
# ---------------------------------------------------------------------------
@jax.jit
def double_conv2d(x_nchw, params):
    """Forward pass matching DoubleConv2d(in_c, out_c, 3) (training-mode BN)."""
    w1, b1, g1, be1, w2, b2, g2, be2 = params
    N, Cin, H, W = x_nchw.shape
    Cout = w1.shape[-1]
    f32 = jnp.float32

    # NCHW -> (N, H, W*Cin): channel-minor lane-dense rows.  No spatial pad
    # here -- padding lives in the kernels' VMEM slab (perf review item 1).
    x2d = jnp.transpose(x_nchw, (0, 2, 3, 1)).reshape(N, H, W * Cin).astype(f32)

    # Banded conv weights (built once, reused across the whole grid), bf16.
    wb1 = _banded_weight(w1, W, MXU_DTYPE)             # (3, (W+2)*Cin,  W*Cout)
    wb2 = _banded_weight(w2, W, MXU_DTYPE)             # (3, (W+2)*Cout, W*Cout)
    b1t = jnp.tile(b1.astype(f32), W).reshape(1, W * Cout)
    b2t = jnp.tile(b2.astype(f32), W).reshape(1, W * Cout)

    # "arbitrary": sequential grid so the zero-halo-once trick is valid on all
    # chips (incl. v7x megacore); explicit VMEM limit with large headroom.
    cparams = pltpu.CompilerParams(
        dimension_semantics=("arbitrary",),
        vmem_limit_bytes=32 * 1024 * 1024)

    # --------------------- pass 1: conv1 + BN1 stats -----------------------
    cost1 = pl.CostEstimate(
        flops=2 * N * K * H * ((W + 2) * Cin) * (W * Cout),
        transcendentals=0,
        bytes_accessed=(x2d.size * 4 + wb1.size * 2
                        + N * H * W * Cout * 2 + N * 2 * W * Cout * 4))
    z1, st1 = pl.pallas_call(
        _conv1_kernel,
        grid=(N,),
        in_specs=[
            pl.BlockSpec((None, H, W * Cin), lambda n: (n, 0, 0)),
            pl.BlockSpec((K, (W + 2) * Cin, W * Cout), lambda n: (0, 0, 0)),
            pl.BlockSpec((1, W * Cout), lambda n: (0, 0)),
        ],
        out_specs=(
            pl.BlockSpec((None, H, W * Cout), lambda n: (n, 0, 0)),
            pl.BlockSpec((None, 2, W * Cout), lambda n: (n, 0, 0)),
        ),
        out_shape=(
            jax.ShapeDtypeStruct((N, H, W * Cout), MXU_DTYPE),   # z1 (bf16)
            jax.ShapeDtypeStruct((N, 2, W * Cout), jnp.float32),  # BN1 stats
        ),
        scratch_shapes=[pltpu.VMEM((H + 2, (W + 2) * Cin), MXU_DTYPE)],
        compiler_params=cparams,
        cost_estimate=cost1,
    )(x2d, wb1, b1t)

    s1, t1 = _fold_bn(st1, H, g1, be1)
    s1t = jnp.tile(s1, W).reshape(1, W * Cout)          # lane order w*Cout+c
    t1t = jnp.tile(t1, W).reshape(1, W * Cout)

    # ------------- pass 2: BN1 + ReLU -> conv2 + BN2 stats -----------------
    cost2 = pl.CostEstimate(
        flops=(2 * N * K * H * ((W + 2) * Cout) * (W * Cout)
               + 3 * N * H * W * Cout),
        transcendentals=0,
        bytes_accessed=(2 * N * H * W * Cout * 2 + wb2.size * 2
                        + N * 2 * W * Cout * 4))
    z2, st2 = pl.pallas_call(
        _conv2_kernel,
        grid=(N,),
        in_specs=[
            pl.BlockSpec((None, H, W * Cout), lambda n: (n, 0, 0)),
            pl.BlockSpec((1, W * Cout), lambda n: (0, 0)),
            pl.BlockSpec((1, W * Cout), lambda n: (0, 0)),
            pl.BlockSpec((K, (W + 2) * Cout, W * Cout), lambda n: (0, 0, 0)),
            pl.BlockSpec((1, W * Cout), lambda n: (0, 0)),
        ],
        out_specs=(
            pl.BlockSpec((None, H, W * Cout), lambda n: (n, 0, 0)),
            pl.BlockSpec((None, 2, W * Cout), lambda n: (n, 0, 0)),
        ),
        out_shape=(
            jax.ShapeDtypeStruct((N, H, W * Cout), MXU_DTYPE),   # z2 (bf16)
            jax.ShapeDtypeStruct((N, 2, W * Cout), jnp.float32),  # BN2 stats
        ),
        scratch_shapes=[pltpu.VMEM((H + 2, (W + 2) * Cout), MXU_DTYPE)],
        compiler_params=cparams,
        cost_estimate=cost2,
    )(z1, s1t, t1t, wb2, b2t)

    s2, t2 = _fold_bn(st2, H, g2, be2)

    # ------- tail: BN2 + ReLU fused by XLA into the NCHW output transpose ---
    # (per perf review: a separate Pallas pass plus a wrapper transpose would
    # cost one extra full HBM round trip for a pure FMA + ReLU).
    y2 = jnp.maximum(
        z2.astype(f32) * jnp.tile(s2, W).reshape(1, 1, W * Cout)
        + jnp.tile(t2, W).reshape(1, 1, W * Cout), 0.0)
    return jnp.transpose(y2.reshape(N, H, W, Cout), (0, 3, 1, 2))


# ---------------------------------------------------------------------------
# params / reference / test harness
# ---------------------------------------------------------------------------
def init_params(key, in_channels, out_channels):
    """Deterministic parameter init (shapes follow the module's __init__)."""
    ks = jax.random.split(key, 8)
    fan1 = in_channels * K * K
    fan2 = out_channels * K * K
    lim1 = 1.0 / (fan1 ** 0.5)
    lim2 = 1.0 / (fan2 ** 0.5)
    w1 = jax.random.uniform(ks[0], (K, K, in_channels, out_channels),
                            jnp.float32, -lim1, lim1)
    b1 = jax.random.uniform(ks[1], (out_channels,), jnp.float32, -lim1, lim1)
    g1 = 1.0 + 0.1 * jax.random.normal(ks[2], (out_channels,), jnp.float32)
    be1 = 0.1 * jax.random.normal(ks[3], (out_channels,), jnp.float32)
    w2 = jax.random.uniform(ks[4], (K, K, out_channels, out_channels),
                            jnp.float32, -lim2, lim2)
    b2 = jax.random.uniform(ks[5], (out_channels,), jnp.float32, -lim2, lim2)
    g2 = 1.0 + 0.1 * jax.random.normal(ks[6], (out_channels,), jnp.float32)
    be2 = 0.1 * jax.random.normal(ks[7], (out_channels,), jnp.float32)
    return (w1, b1, g1, be1, w2, b2, g2, be2)


def _reference(x_nchw, params, mxu_dtype, act_dtype):
    """Plain-JAX reference.  `mxu_dtype`: conv-input dtype (f32 accumulation).
    `act_dtype`: dtype the conv outputs are rounded to before BN is applied
    (matching the kernel's stored inter-pass activations).  BN statistics are
    always computed from the unrounded f32 conv output, like the kernel."""
    w1, b1, g1, be1, w2, b2, g2, be2 = params

    def conv(x, w_hwio, b):
        w_oihw = jnp.transpose(w_hwio, (3, 2, 0, 1)).astype(mxu_dtype)
        y = lax.conv_general_dilated(
            x.astype(mxu_dtype), w_oihw, window_strides=(1, 1),
            padding=((1, 1), (1, 1)),
            dimension_numbers=("NCHW", "OIHW", "NCHW"),
            preferred_element_type=jnp.float32)
        return y + b[None, :, None, None]

    def bn_relu(y, g, be):
        mean = jnp.mean(y, axis=(0, 2, 3), keepdims=True)
        var = jnp.mean((y - mean) ** 2, axis=(0, 2, 3), keepdims=True)
        yq = y.astype(act_dtype).astype(jnp.float32)
        yn = (yq - mean) * lax.rsqrt(var + EPS)
        yn = yn * g[None, :, None, None] + be[None, :, None, None]
        return jnp.maximum(yn, 0.0)

    y = bn_relu(conv(x_nchw.astype(jnp.float32), w1, b1), g1, be1)
    return bn_relu(conv(y, w2, b2), g2, be2)


if __name__ == "__main__":
    key = jax.random.PRNGKey(0)
    k_x, k_p = jax.random.split(key)

    N, Cin, H, W = 2, 4, 16, 16
    Cout = 8

    x = jax.random.normal(k_x, (N, Cin, H, W), jnp.float32)
    params = init_params(k_p, Cin, Cout)

    out = jax.block_until_ready(double_conv2d(x, params))
    assert out.shape == (N, Cout, H, W), out.shape

    # Matched-precision reference (bf16 MXU inputs + bf16-stored inter-pass
    # activations, like the kernel).  bf16 activation storage can flip single
    # rounding ulps vs the reference (different f32 accumulation order), so
    # the max-abs check is looser while the mean-abs check stays tight.
    ref_bf = _reference(x, params, MXU_DTYPE, MXU_DTYPE)
    assert jnp.allclose(out, ref_bf, atol=5e-2, rtol=5e-2), float(
        jnp.max(jnp.abs(out - ref_bf)))
    assert float(jnp.mean(jnp.abs(out - ref_bf))) < 5e-3

    # Sanity bound vs the full-f32 PyTorch-semantics reference.
    ref32 = _reference(x, params, jnp.float32, jnp.float32)
    assert jnp.allclose(out, ref32, atol=1e-1, rtol=1e-1), float(
        jnp.max(jnp.abs(out - ref32)))

    print("KERNEL_OK")
</pallas_src>

<mosaic_0001>
module attributes {stable_mosaic.version = 11 : i64} {
  func.func @_conv1_kernel(%arg0: i32, %arg1: memref<1x16x64xf32, #tpu.memory_space<vmem>>, %arg2: memref<3x72x128xbf16, #tpu.memory_space<vmem>>, %arg3: memref<1x128xf32, #tpu.memory_space<vmem>>, %arg4: memref<1x16x128xbf16, #tpu.memory_space<vmem>>, %arg5: memref<1x2x128xf32, #tpu.memory_space<vmem>>, %arg6: memref<18x72xbf16, #tpu.memory_space<vmem>>) attributes {dimension_semantics = [#tpu.dimension_semantics<arbitrary>], iteration_bounds = array<i64: 2>, scalar_prefetch = 0 : i64, scratch_operands = 1 : i64, tpu.core_type = #tpu.core_type<tc>, window_params = [{transform_indices = @transform_0, window_bounds = array<i64: 1, 16, 64>}, {pipeline_mode = #tpu.pipeline_mode<synchronous>, transform_indices = @transform_1, window_bounds = array<i64: 3, 72, 128>}, {pipeline_mode = #tpu.pipeline_mode<synchronous>, transform_indices = @transform_2, window_bounds = array<i64: 1, 128>}, {transform_indices = @transform_3, window_bounds = array<i64: 1, 16, 128>}, {transform_indices = @transform_4, window_bounds = array<i64: 1, 2, 128>}]} {
    %c0_i32 = arith.constant 0 : i32
    %0 = arith.cmpi eq, %arg0, %c0_i32 : i32
    %1 = arith.extui %0 : i1 to i32
    %c0_i32_0 = arith.constant 0 : i32
    %2 = arith.cmpi ne, %1, %c0_i32_0 : i32
    scf.if %2 {
      %cst_34 = arith.constant 0.000000e+00 : bf16
      %43 = vector.broadcast %cst_34 : bf16 to vector<18x72xbf16>
      %c0_35 = arith.constant 0 : index
      %c0_36 = arith.constant 0 : index
      %44 = vector.load %arg6[%c0_35, %c0_36] : memref<18x72xbf16, #tpu.memory_space<vmem>>, vector<18x72xbf16>
      tpu.vector_store %arg6[%c0_35, %c0_36], %43 {strides = array<i32>} : memref<18x72xbf16, #tpu.memory_space<vmem>>, vector<18x72xbf16>,
    } else {
    }
    %c0 = arith.constant 0 : index
    %c0_1 = arith.constant 0 : index
    %c0_2 = arith.constant 0 : index
    %3 = vector.load %arg1[%c0, %c0_1, %c0_2] : memref<1x16x64xf32, #tpu.memory_space<vmem>>, vector<1x16x64xf32>
    %4 = vector.shape_cast %3 : vector<1x16x64xf32> to vector<16x64xf32>
    %5 = arith.truncf %4 : vector<16x64xf32> to vector<16x64xbf16>
    %c1 = arith.constant 1 : index
    %c0_3 = arith.constant 0 : index
    %6 = vector.load %arg6[%c1, %c0_3] : memref<18x72xbf16, #tpu.memory_space<vmem>>, vector<16x64xbf16>
    tpu.vector_store %arg6[%c1, %c0_3], %5 {strides = array<i32>} : memref<18x72xbf16, #tpu.memory_space<vmem>>, vector<16x64xbf16>,
    %c0_4 = arith.constant 0 : index
    %c0_5 = arith.constant 0 : index
    %7 = vector.load %arg3[%c0_4, %c0_5] : memref<1x128xf32, #tpu.memory_space<vmem>>, vector<1x128xf32>
    %c0_6 = arith.constant 0 : index
    %c0_7 = arith.constant 0 : index
    %8 = vector.load %arg6[%c0_6, %c0_7] : memref<18x72xbf16, #tpu.memory_space<vmem>>, vector<16x72xbf16>
    %c0_8 = arith.constant 0 : index
    %c0_9 = arith.constant 0 : index
    %c0_10 = arith.constant 0 : index
    %9 = vector.load %arg2[%c0_8, %c0_9, %c0_10] : memref<3x72x128xbf16, #tpu.memory_space<vmem>>, vector<1x72x128xbf16>
    %10 = vector.shape_cast %9 : vector<1x72x128xbf16> to vector<72x128xbf16>
    %cst = arith.constant dense<0.000000e+00> : vector<16x128xf32>
    %11 = tpu.matmul %8, %10, %cst {dimension_numbers = #tpu.dot_dimension_numbers<[1], [0], [0], [1], [0, 0, 1, 1], [], []>} : vector<16x72xbf16>, vector<72x128xbf16>, vector<16x128xf32> -> vector<16x128xf32>
    %12 = vector.broadcast %7 : vector<1x128xf32> to vector<16x128xf32>
    %13 = arith.addf %12, %11 : vector<16x128xf32>
    %c1_11 = arith.constant 1 : index
    %c0_12 = arith.constant 0 : index
    %14 = vector.load %arg6[%c1_11, %c0_12] : memref<18x72xbf16, #tpu.memory_space<vmem>>, vector<16x72xbf16>
    %c1_13 = arith.constant 1 : index
    %c0_14 = arith.constant 0 : index
    %c0_15 = arith.constant 0 : index
    %15 = vector.load %arg2[%c1_13, %c0_14, %c0_15] : memref<3x72x128xbf16, #tpu.memory_space<vmem>>, vector<1x72x128xbf16>
    %16 = vector.shape_cast %15 : vector<1x72x128xbf16> to vector<72x128xbf16>
    %cst_16 = arith.constant dense<0.000000e+00> : vector<16x128xf32>
    %17 = tpu.matmul %14, %16, %cst_16 {dimension_numbers = #tpu.dot_dimension_numbers<[1], [0], [0], [1], [0, 0, 1, 1], [], []>} : vector<16x72xbf16>, vector<72x128xbf16>, vector<16x128xf32> -> vector<16x128xf32>
    %18 = arith.addf %13, %17 : vector<16x128xf32>
    %c2 = arith.constant 2 : index
    %c0_17 = arith.constant 0 : index
    %19 = vector.load %arg6[%c2, %c0_17] : memref<18x72xbf16, #tpu.memory_space<vmem>>, vector<16x72xbf16>
    %c2_18 = arith.constant 2 : index
    %c0_19 = arith.constant 0 : index
    %c0_20 = arith.constant 0 : index
    %20 = vector.load %arg2[%c2_18, %c0_19, %c0_20] : memref<3x72x128xbf16, #tpu.memory_space<vmem>>, vector<1x72x128xbf16>
    %21 = vector.shape_cast %20 : vector<1x72x128xbf16> to vector<72x128xbf16>
    %cst_21 = arith.constant dense<0.000000e+00> : vector<16x128xf32>
    %22 = tpu.matmul %19, %21, %cst_21 {dimension_numbers = #tpu.dot_dimension_numbers<[1], [0], [0], [1], [0, 0, 1, 1], [], []>} : vector<16x72xbf16>, vector<72x128xbf16>, vector<16x128xf32> -> vector<16x128xf32>
    %23 = arith.addf %18, %22 : vector<16x128xf32>
    %24 = arith.truncf %23 : vector<16x128xf32> to vector<16x128xbf16>
    %c0_22 = arith.constant 0 : index
    %c0_23 = arith.constant 0 : index
    %c0_24 = arith.constant 0 : index
    %25 = vector.load %arg4[%c0_22, %c0_23, %c0_24] : memref<1x16x128xbf16, #tpu.memory_space<vmem>>, vector<1x16x128xbf16>
    %26 = vector.shape_cast %25 : vector<1x16x128xbf16> to vector<16x128xbf16>
    %27 = vector.shape_cast %24 : vector<16x128xbf16> to vector<1x16x128xbf16>
    tpu.vector_store %arg4[%c0_22, %c0_23, %c0_24], %27 {strides = array<i32>} : memref<1x16x128xbf16, #tpu.memory_space<vmem>>, vector<1x16x128xbf16>,
    %cst_25 = arith.constant dense<0.000000e+00> : vector<128xf32>
    %28 = vector.multi_reduction <add>, %23, %cst_25 [0] : vector<16x128xf32> to vector<128xf32>
    %29 = vector.shape_cast %28 : vector<128xf32> to vector<1x128xf32>
    %cst_26 = arith.constant 1.600000e+01 : f32
    %30 = vector.broadcast %cst_26 : f32 to vector<1x128xf32>
    %31 = arith.divf %29, %30 : vector<1x128xf32>
    %c0_27 = arith.constant 0 : index
    %c0_28 = arith.constant 0 : index
    %c0_29 = arith.constant 0 : index
    %32 = vector.load %arg5[%c0_27, %c0_28, %c0_29] : memref<1x2x128xf32, #tpu.memory_space<vmem>>, vector<1x1x128xf32>
    %33 = vector.shape_cast %32 : vector<1x1x128xf32> to vector<1x128xf32>
    %34 = vector.shape_cast %31 : vector<1x128xf32> to vector<1x1x128xf32>
    tpu.vector_store %arg5[%c0_27, %c0_28, %c0_29], %34 {strides = array<i32>} : memref<1x2x128xf32, #tpu.memory_space<vmem>>, vector<1x1x128xf32>,
    %35 = vector.broadcast %31 : vector<1x128xf32> to vector<16x128xf32>
    %36 = arith.subf %23, %35 : vector<16x128xf32>
    %37 = arith.mulf %36, %36 : vector<16x128xf32>
    %cst_30 = arith.constant dense<0.000000e+00> : vector<128xf32>
    %38 = vector.multi_reduction <add>, %37, %cst_30 [0] : vector<16x128xf32> to vector<128xf32>
    %39 = vector.shape_cast %38 : vector<128xf32> to vector<1x128xf32>
    %c0_31 = arith.constant 0 : index
    %c1_32 = arith.constant 1 : index
    %c0_33 = arith.constant 0 : index
    %40 = vector.load %arg5[%c0_31, %c1_32, %c0_33] : memref<1x2x128xf32, #tpu.memory_space<vmem>>, vector<1x1x128xf32>
    %41 = vector.shape_cast %40 : vector<1x1x128xf32> to vector<1x128xf32>
    %42 = vector.shape_cast %39 : vector<1x128xf32> to vector<1x1x128xf32>
    tpu.vector_store %arg5[%c0_31, %c1_32, %c0_33], %42 {strides = array<i32>} : memref<1x2x128xf32, #tpu.memory_space<vmem>>, vector<1x1x128xf32>,
    return
  }
  func.func @transform_0(%arg0: i32) -> (i32, i32, i32) {
    %c0_i32 = arith.constant 0 : i32
    %c0_i32_0 = arith.constant 0 : i32
    %c0_i32_1 = arith.constant 0 : i32
    return %arg0, %c0_i32, %c0_i32_0 : i32, i32, i32
  }
  func.func @transform_1(%arg0: i32) -> (i32, i32, i32) {
    %c0_i32 = arith.constant 0 : i32
    %c0_i32_0 = arith.constant 0 : i32
    %c0_i32_1 = arith.constant 0 : i32
    %c0_i32_2 = arith.constant 0 : i32
    return %c0_i32, %c0_i32_0, %c0_i32_1 : i32, i32, i32
  }
  func.func @transform_2(%arg0: i32) -> (i32, i32) {
    %c0_i32 = arith.constant 0 : i32
    %c0_i32_0 = arith.constant 0 : i32
    %c0_i32_1 = arith.constant 0 : i32
    return %c0_i32, %c0_i32_0 : i32, i32
  }
  func.func @transform_3(%arg0: i32) -> (i32, i32, i32) {
    %c0_i32 = arith.constant 0 : i32
    %c0_i32_0 = arith.constant 0 : i32
    %c0_i32_1 = arith.constant 0 : i32
    return %arg0, %c0_i32, %c0_i32_0 : i32, i32, i32
  }
  func.func @transform_4(%arg0: i32) -> (i32, i32, i32) {
    %c0_i32 = arith.constant 0 : i32
    %c0_i32_0 = arith.constant 0 : i32
    %c0_i32_1 = arith.constant 0 : i32
    return %arg0, %c0_i32, %c0_i32_0 : i32, i32, i32
  }
}

module attributes {stable_mosaic.version = 11 : i64} {
  func.func @_conv2_kernel(%arg0: i32, %arg1: memref<1x16x128xbf16, #tpu.memory_space<vmem>>, %arg2: memref<1x128xf32, #tpu.memory_space<vmem>>, %arg3: memref<1x128xf32, #tpu.memory_space<vmem>>, %arg4: memref<3x144x128xbf16, #tpu.memory_space<vmem>>, %arg5: memref<1x128xf32, #tpu.memory_space<vmem>>, %arg6: memref<1x16x128xbf16, #tpu.memory_space<vmem>>, %arg7: memref<1x2x128xf32, #tpu.memory_space<vmem>>, %arg8: memref<18x144xbf16, #tpu.memory_space<vmem>>) attributes {dimension_semantics = [#tpu.dimension_semantics<arbitrary>], iteration_bounds = array<i64: 2>, scalar_prefetch = 0 : i64, scratch_operands = 1 : i64, tpu.core_type = #tpu.core_type<tc>, window_params = [{transform_indices = @transform_0, window_bounds = array<i64: 1, 16, 128>}, {pipeline_mode = #tpu.pipeline_mode<synchronous>, transform_indices = @transform_1, window_bounds = array<i64: 1, 128>}, {pipeline_mode = #tpu.pipeline_mode<synchronous>, transform_indices = @transform_2, window_bounds = array<i64: 1, 128>}, {pipeline_mode = #tpu.pipeline_mode<synchronous>, transform_indices = @transform_3, window_bounds = array<i64: 3, 144, 128>}, {pipeline_mode = #tpu.pipeline_mode<synchronous>, transform_indices = @transform_4, window_bounds = array<i64: 1, 128>}, {transform_indices = @transform_5, window_bounds = array<i64: 1, 16, 128>}, {transform_indices = @transform_6, window_bounds = array<i64: 1, 2, 128>}]} {
    %c0_i32 = arith.constant 0 : i32
    %0 = arith.cmpi eq, %arg0, %c0_i32 : i32
    %1 = arith.extui %0 : i1 to i32
    %c0_i32_0 = arith.constant 0 : i32
    %2 = arith.cmpi ne, %1, %c0_i32_0 : i32
    scf.if %2 {
      %cst_39 = arith.constant 0.000000e+00 : bf16
      %52 = vector.broadcast %cst_39 : bf16 to vector<18x144xbf16>
      %c0_40 = arith.constant 0 : index
      %c0_41 = arith.constant 0 : index
      %53 = vector.load %arg8[%c0_40, %c0_41] : memref<18x144xbf16, #tpu.memory_space<vmem>>, vector<18x144xbf16>
      tpu.vector_store %arg8[%c0_40, %c0_41], %52 {strides = array<i32>} : memref<18x144xbf16, #tpu.memory_space<vmem>>, vector<18x144xbf16>,
    } else {
    }
    %c0 = arith.constant 0 : index
    %c0_1 = arith.constant 0 : index
    %c0_2 = arith.constant 0 : index
    %3 = vector.load %arg1[%c0, %c0_1, %c0_2] : memref<1x16x128xbf16, #tpu.memory_space<vmem>>, vector<1x16x128xbf16>
    %4 = vector.shape_cast %3 : vector<1x16x128xbf16> to vector<16x128xbf16>
    %5 = arith.extf %4 : vector<16x128xbf16> to vector<16x128xf32>
    %c0_3 = arith.constant 0 : index
    %c0_4 = arith.constant 0 : index
    %6 = vector.load %arg2[%c0_3, %c0_4] : memref<1x128xf32, #tpu.memory_space<vmem>>, vector<1x128xf32>
    %7 = vector.broadcast %6 : vector<1x128xf32> to vector<16x128xf32>
    %8 = arith.mulf %5, %7 : vector<16x128xf32>
    %c0_5 = arith.constant 0 : index
    %c0_6 = arith.constant 0 : index
    %9 = vector.load %arg3[%c0_5, %c0_6] : memref<1x128xf32, #tpu.memory_space<vmem>>, vector<1x128xf32>
    %10 = vector.broadcast %9 : vector<1x128xf32> to vector<16x128xf32>
    %11 = arith.addf %8, %10 : vector<16x128xf32>
    %cst = arith.constant 0.000000e+00 : f32
    %12 = vector.broadcast %cst : f32 to vector<16x128xf32>
    %13 = arith.maximumf %11, %12 : vector<16x128xf32>
    %14 = arith.truncf %13 : vector<16x128xf32> to vector<16x128xbf16>
    %c1 = arith.constant 1 : index
    %c0_7 = arith.constant 0 : index
    %15 = vector.load %arg8[%c1, %c0_7] : memref<18x144xbf16, #tpu.memory_space<vmem>>, vector<16x128xbf16>
    tpu.vector_store %arg8[%c1, %c0_7], %14 {strides = array<i32>} : memref<18x144xbf16, #tpu.memory_space<vmem>>, vector<16x128xbf16>,
    %c0_8 = arith.constant 0 : index
    %c0_9 = arith.constant 0 : index
    %16 = vector.load %arg5[%c0_8, %c0_9] : memref<1x128xf32, #tpu.memory_space<vmem>>, vector<1x128xf32>
    %c0_10 = arith.constant 0 : index
    %c0_11 = arith.constant 0 : index
    %17 = vector.load %arg8[%c0_10, %c0_11] : memref<18x144xbf16, #tpu.memory_space<vmem>>, vector<16x144xbf16>
    %c0_12 = arith.constant 0 : index
    %c0_13 = arith.constant 0 : index
    %c0_14 = arith.constant 0 : index
    %18 = vector.load %arg4[%c0_12, %c0_13, %c0_14] : memref<3x144x128xbf16, #tpu.memory_space<vmem>>, vector<1x144x128xbf16>
    %19 = vector.shape_cast %18 : vector<1x144x128xbf16> to vector<144x128xbf16>
    %cst_15 = arith.constant dense<0.000000e+00> : vector<16x128xf32>
    %20 = tpu.matmul %17, %19, %cst_15 {dimension_numbers = #tpu.dot_dimension_numbers<[1], [0], [0], [1], [0, 0, 1, 1], [], []>} : vector<16x144xbf16>, vector<144x128xbf16>, vector<16x128xf32> -> vector<16x128xf32>
    %21 = vector.broadcast %16 : vector<1x128xf32> to vector<16x128xf32>
    %22 = arith.addf %21, %20 : vector<16x128xf32>
    %c1_16 = arith.constant 1 : index
    %c0_17 = arith.constant 0 : index
    %23 = vector.load %arg8[%c1_16, %c0_17] : memref<18x144xbf16, #tpu.memory_space<vmem>>, vector<16x144xbf16>
    %c1_18 = arith.constant 1 : index
    %c0_19 = arith.constant 0 : index
    %c0_20 = arith.constant 0 : index
    %24 = vector.load %arg4[%c1_18, %c0_19, %c0_20] : memref<3x144x128xbf16, #tpu.memory_space<vmem>>, vector<1x144x128xbf16>
    %25 = vector.shape_cast %24 : vector<1x144x128xbf16> to vector<144x128xbf16>
    %cst_21 = arith.constant dense<0.000000e+00> : vector<16x128xf32>
    %26 = tpu.matmul %23, %25, %cst_21 {dimension_numbers = #tpu.dot_dimension_numbers<[1], [0], [0], [1], [0, 0, 1, 1], [], []>} : vector<16x144xbf16>, vector<144x128xbf16>, vector<16x128xf32> -> vector<16x128xf32>
    %27 = arith.addf %22, %26 : vector<16x128xf32>
    %c2 = arith.constant 2 : index
    %c0_22 = arith.constant 0 : index
    %28 = vector.load %arg8[%c2, %c0_22] : memref<18x144xbf16, #tpu.memory_space<vmem>>, vector<16x144xbf16>
    %c2_23 = arith.constant 2 : index
    %c0_24 = arith.constant 0 : index
    %c0_25 = arith.constant 0 : index
    %29 = vector.load %arg4[%c2_23, %c0_24, %c0_25] : memref<3x144x128xbf16, #tpu.memory_space<vmem>>, vector<1x144x128xbf16>
    %30 = vector.shape_cast %29 : vector<1x144x128xbf16> to vector<144x128xbf16>
    %cst_26 = arith.constant dense<0.000000e+00> : vector<16x128xf32>
    %31 = tpu.matmul %28, %30, %cst_26 {dimension_numbers = #tpu.dot_dimension_numbers<[1], [0], [0], [1], [0, 0, 1, 1], [], []>} : vector<16x144xbf16>, vector<144x128xbf16>, vector<16x128xf32> -> vector<16x128xf32>
    %32 = arith.addf %27, %31 : vector<16x128xf32>
    %33 = arith.truncf %32 : vector<16x128xf32> to vector<16x128xbf16>
    %c0_27 = arith.constant 0 : index
    %c0_28 = arith.constant 0 : index
    %c0_29 = arith.constant 0 : index
    %34 = vector.load %arg6[%c0_27, %c0_28, %c0_29] : memref<1x16x128xbf16, #tpu.memory_space<vmem>>, vector<1x16x128xbf16>
    %35 = vector.shape_cast %34 : vector<1x16x128xbf16> to vector<16x128xbf16>
    %36 = vector.shape_cast %33 : vector<16x128xbf16> to vector<1x16x128xbf16>
    tpu.vector_store %arg6[%c0_27, %c0_28, %c0_29], %36 {strides = array<i32>} : memref<1x16x128xbf16, #tpu.memory_space<vmem>>, vector<1x16x128xbf16>,
    %cst_30 = arith.constant dense<0.000000e+00> : vector<128xf32>
    %37 = vector.multi_reduction <add>, %32, %cst_30 [0] : vector<16x128xf32> to vector<128xf32>
    %38 = vector.shape_cast %37 : vector<128xf32> to vector<1x128xf32>
    %cst_31 = arith.constant 1.600000e+01 : f32
    %39 = vector.broadcast %cst_31 : f32 to vector<1x128xf32>
    %40 = arith.divf %38, %39 : vector<1x128xf32>
    %c0_32 = arith.constant 0 : index
    %c0_33 = arith.constant 0 : index
    %c0_34 = arith.constant 0 : index
    %41 = vector.load %arg7[%c0_32, %c0_33, %c0_34] : memref<1x2x128xf32, #tpu.memory_space<vmem>>, vector<1x1x128xf32>
    %42 = vector.shape_cast %41 : vector<1x1x128xf32> to vector<1x128xf32>
    %43 = vector.shape_cast %40 : vector<1x128xf32> to vector<1x1x128xf32>
    tpu.vector_store %arg7[%c0_32, %c0_33, %c0_34], %43 {strides = array<i32>} : memref<1x2x128xf32, #tpu.memory_space<vmem>>, vector<1x1x128xf32>,
    %44 = vector.broadcast %40 : vector<1x128xf32> to vector<16x128xf32>
    %45 = arith.subf %32, %44 : vector<16x128xf32>
    %46 = arith.mulf %45, %45 : vector<16x128xf32>
    %cst_35 = arith.constant dense<0.000000e+00> : vector<128xf32>
    %47 = vector.multi_reduction <add>, %46, %cst_35 [0] : vector<16x128xf32> to vector<128xf32>
    %48 = vector.shape_cast %47 : vector<128xf32> to vector<1x128xf32>
    %c0_36 = arith.constant 0 : index
    %c1_37 = arith.constant 1 : index
    %c0_38 = arith.constant 0 : index
    %49 = vector.load %arg7[%c0_36, %c1_37, %c0_38] : memref<1x2x128xf32, #tpu.memory_space<vmem>>, vector<1x1x128xf32>
    %50 = vector.shape_cast %49 : vector<1x1x128xf32> to vector<1x128xf32>
    %51 = vector.shape_cast %48 : vector<1x128xf32> to vector<1x1x128xf32>
    tpu.vector_store %arg7[%c0_36, %c1_37, %c0_38], %51 {strides = array<i32>} : memref<1x2x128xf32, #tpu.memory_space<vmem>>, vector<1x1x128xf32>,
    return
  }
  func.func @transform_0(%arg0: i32) -> (i32, i32, i32) {
    %c0_i32 = arith.constant 0 : i32
    %c0_i32_0 = arith.constant 0 : i32
    %c0_i32_1 = arith.constant 0 : i32
    return %arg0, %c0_i32, %c0_i32_0 : i32, i32, i32
  }
  func.func @transform_1(%arg0: i32) -> (i32, i32) {
    %c0_i32 = arith.constant 0 : i32
    %c0_i32_0 = arith.constant 0 : i32
    %c0_i32_1 = arith.constant 0 : i32
    return %c0_i32, %c0_i32_0 : i32, i32
  }
  func.func @transform_2(%arg0: i32) -> (i32, i32) {
    %c0_i32 = arith.constant 0 : i32
    %c0_i32_0 = arith.constant 0 : i32
    %c0_i32_1 = arith.constant 0 : i32
    return %c0_i32, %c0_i32_0 : i32, i32
  }
  func.func @transform_3(%arg0: i32) -> (i32, i32, i32) {
    %c0_i32 = arith.constant 0 : i32
    %c0_i32_0 = arith.constant 0 : i32
    %c0_i32_1 = arith.constant 0 : i32
    %c0_i32_2 = arith.constant 0 : i32
    return %c0_i32, %c0_i32_0, %c0_i32_1 : i32, i32, i32
  }
  func.func @transform_4(%arg0: i32) -> (i32, i32) {
    %c0_i32 = arith.constant 0 : i32
    %c0_i32_0 = arith.constant 0 : i32
    %c0_i32_1 = arith.constant 0 : i32
    return %c0_i32, %c0_i32_0 : i32, i32
  }
  func.func @transform_5(%arg0: i32) -> (i32, i32, i32) {
    %c0_i32 = arith.constant 0 : i32
    %c0_i32_0 = arith.constant 0 : i32
    %c0_i32_1 = arith.constant 0 : i32
    return %arg0, %c0_i32, %c0_i32_0 : i32, i32, i32
  }
  func.func @transform_6(%arg0: i32) -> (i32, i32, i32) {
    %c0_i32 = arith.constant 0 : i32
    %c0_i32_0 = arith.constant 0 : i32
    %c0_i32_1 = arith.constant 0 : i32
    return %arg0, %c0_i32, %c0_i32_0 : i32, i32, i32
  }
}

</mosaic_0001>

<llo_original>
// kernel: tile.33
$region0: #{tile.33}
  #allocation0 [shape = 's32[1]{0}', space=sflag, size = 0x4, scoped, tag = 'scoped memory for tile.33']
  %s0 = inlined_call_operand.vmem [shape: f32[8], index: 0, kind: input, shape index: {}]
  %s1 = inlined_call_operand.vmem [shape: f32[16,8], index: 1, kind: output, shape index: {}]
  // Predicated region
  $region2: #{tile.33} parent=0 // pred_check
    _
  $region3: #{tile.33} parent=0 // pred_check_branch
    %3 = sbr.rel (0) target = $region5
  $region4: #{tile.33} parent=0 // pred_region
    _
  $region5: #{tile.33} parent=0 // pred_fallthru
    _
  %v4 = vld [vmem:[%s0] ss:$0 sm:$0xff]
  %5 = vst [vmem:[%s1] sm:$0xff] %v4
  %s6 = scalar_lea.vmem %s1, 8
  %7 = vst [vmem:[%s6] sm:$0xff] %v4

// kernel: tile.34
$region0: #{tile.34}
  %s0 = inlined_call_operand.vmem [shape: f32[16,8], index: 0, kind: input, shape index: {}]
  %s1 = inlined_call_operand.vmem [shape: f32[1,128], index: 1, kind: output, shape index: {}]
  $region1: #{tile.34} parent=0
    #allocation0 [shape = 'u8[4096]{0}', space=vmem, size = 0x1000, scoped, tag = 'scoped mem for output reshape']
    %v2 = vld [vmem:[%s0] sm:$0x1]
    %vm3 = vcmask 64512
    %4 = vst.msk [vmem:[#allocation0] sm:$0x1] %vm3, %v2
    %s5 = scalar_lea.vmem %s0, 15
    %v6 = vld [vmem:[%s5] sm:$0x1]
    %7 = vrot.lane.b32.xlu0 %v6, 120
    %v8 = vpop.permute.xlu0 %7
    %vm9 = vcmask 1048512
    %10 = vst.msk [vmem:[#allocation0] sm:$0x1] %vm9, %v8
    %s11 = scalar_lea.vmem %s0, 14
    %v12 = vld [vmem:[%s11] sm:$0x1]
    %13 = vrot.lane.b32.xlu0 %v12, 112
    %v14 = vpop.permute.xlu0 %13
    %vm15 = vcmask 982912
    %16 = vst.msk [vmem:[#allocation0] sm:$0x1] %vm15, %v14
    %s17 = scalar_lea.vmem %s0, 13
    %v18 = vld [vmem:[%s17] sm:$0x1]
    %19 = vrot.lane.b32.xlu0 %v18, 104
    %v20 = vpop.permute.xlu0 %19
    %vm21 = vcmask 917312
    %22 = vst.msk [vmem:[#allocation0] sm:$0x1] %vm21, %v20
    %s23 = scalar_lea.vmem %s0, 12
    %v24 = vld [vmem:[%s23] sm:$0x1]
    %25 = vrot.lane.b32.xlu0 %v24, 96
    %v26 = vpop.permute.xlu0 %25
    %vm27 = vcmask 851712
    %28 = vst.msk [vmem:[#allocation0] sm:$0x1] %vm27, %v26
    %s29 = scalar_lea.vmem %s0, 11
    %v30 = vld [vmem:[%s29] sm:$0x1]
    %31 = vrot.lane.b32.xlu0 %v30, 88
    %v32 = vpop.permute.xlu0 %31
    %vm33 = vcmask 786112
    %34 = vst.msk [vmem:[#allocation0] sm:$0x1] %vm33, %v32
    %s35 = scalar_lea.vmem %s0, 10
    %v36 = vld [vmem:[%s35] sm:$0x1]
    %37 = vrot.lane.b32.xlu0 %v36, 80
    %v38 = vpop.permute.xlu0 %37
    %vm39 = vcmask 720512
    %40 = vst.msk [vmem:[#allocation0] sm:$0x1] %vm39, %v38
    %s41 = scalar_lea.vmem %s0, 9
    %v42 = vld [vmem:[%s41] sm:$0x1]
    %43 = vrot.lane.b32.xlu0 %v42, 72
    %v44 = vpop.permute.xlu0 %43
    %vm45 = vcmask 654912
    %46 = vst.msk [vmem:[#allocation0] sm:$0x1] %vm45, %v44
    %s47 = scalar_lea.vmem %s0, 8
    %v48 = vld [vmem:[%s47] sm:$0x1]
    %49 = vrot.lane.b32.xlu0 %v48, 64
    %v50 = vpop.permute.xlu0 %49
    %vm51 = vcmask 589312
    %52 = vst.msk [vmem:[#allocation0] sm:$0x1] %vm51, %v50
    %s53 = scalar_lea.vmem %s0, 7
    %v54 = vld [vmem:[%s53] sm:$0x1]
    %55 = vrot.lane.b32.xlu0 %v54, 56
    %v56 = vpop.permute.xlu0 %55
    %vm57 = vcmask 523712
    %58 = vst.msk [vmem:[#allocation0] sm:$0x1] %vm57, %v56
    %s59 = scalar_lea.vmem %s0, 6
    %v60 = vld [vmem:[%s59] sm:$0x1]
    %61 = vrot.lane.b32.xlu0 %v60, 48
    %v62 = vpop.permute.xlu0 %61
    %vm63 = vcmask 458112
    %64 = vst.msk [vmem:[#allocation0] sm:$0x1] %vm63, %v62
    %s65 = scalar_lea.vmem %s0, 5
    %v66 = vld [vmem:[%s65] sm:$0x1]
    %67 = vrot.lane.b32.xlu0 %v66, 40
    %v68 = vpop.permute.xlu0 %67
    %vm69 = vcmask 392512
    %70 = vst.msk [vmem:[#allocation0] sm:$0x1] %vm69, %v68
    %s71 = scalar_lea.vmem %s0, 4
    %v72 = vld [vmem:[%s71] sm:$0x1]
    %73 = vrot.lane.b32.xlu0 %v72, 32
    %v74 = vpop.permute.xlu0 %73
    %vm75 = vcmask 326912
    %76 = vst.msk [vmem:[#allocation0] sm:$0x1] %vm75, %v74
    %s77 = scalar_lea.vmem %s0, 3
    %v78 = vld [vmem:[%s77] sm:$0x1]
    %79 = vrot.lane.b32.xlu0 %v78, 24
    %v80 = vpop.permute.xlu0 %79
    %vm81 = vcmask 261312
    %82 = vst.msk [vmem:[#allocation0] sm:$0x1] %vm81, %v80
    %s83 = scalar_lea.vmem %s0, 2
    %v84 = vld [vmem:[%s83] sm:$0x1]
    %85 = vrot.lane.b32.xlu0 %v84, 16
    %v86 = vpop.permute.xlu0 %85
    %vm87 = vcmask 195712
    %88 = vst.msk [vmem:[#allocation0] sm:$0x1] %vm87, %v86
    %s89 = scalar_lea.vmem %s0, 1
    %v90 = vld [vmem:[%s89] sm:$0x1]
    %91 = vrot.lane.b32.xlu0 %v90, 8
    %v92 = vpop.permute.xlu0 %91
    %vm93 = vcmask 130112
    %94 = vst.msk [vmem:[#allocation0] sm:$0x1] %vm93, %v92
    %s96 = ssub.s32 2, 1
    %v97 = vld [vmem:[#allocation0] sm:%s96]
    %s99 = ssub.s32 2, 1
    %100 = vst [vmem:[%s1] sm:%s99] %v97

// kernel: double_conv2d.2
$region0: #{double_conv2d.2}
  #allocation0 [shape = 'u32[]', space=smem, size = 0x4, offset = 0x4, fixed_abs, tag = 'smem constant byte address 0x4 - core index']
  #allocation1 [shape = 'u32[72,128]{1,0:T(1,128)}', space=vmem, size = 0x9000, scoped, tag = 'internal scratch']
  #allocation2 [shape = 'bf16[18,72]{1,0:T(8,128)(2,1)}', space=vmem, size = 0x1800, scoped, tag = 'scratch operand']
  %s0 = inlined_call_operand.vmem [shape: f32[2,16,64], index: 0, kind: input, shape index: {}]
  %s1 = inlined_call_operand.vmem [shape: bf16[3,72,128], index: 1, kind: input, shape index: {}]
  %s2 = inlined_call_operand.vmem [shape: f32[1,128], index: 2, kind: input, shape index: {}]
  %s3 = inlined_call_operand.vmem [shape: bf16[2,16,128], index: 3, kind: output, shape index: {0}]
  %s4 = inlined_call_operand.vmem [shape: f32[2,2,128], index: 4, kind: output, shape index: {1}]
  %5 = xla_tuple %s3, %s4
  %s6 = sld [smem:[#allocation0]]
  $region57: #{double_conv2d.2} parent=0
    _
  %s8 = ssub.s32 1, %s6
  %s9 = scalar_select 0, %s8, %s6
  loop: start=0, step=1, limit=4
  $region2: #{double_conv2d.2} parent=0 // loop_pre_header
    _
  $region3: #{double_conv2d.2} parent=0 // loop_header
    %s11 = sphi 0, %s15
    %p12 = scmp.ge.s32.totalorder %s11, 4
    %s21 = sphi 0, %s23
    %s24 = sphi 0, %s21
    %s25 = sphi 0, %s24
    %s41 = sphi 0, %s25
    %s45 = sphi 0, %s45
    %s47 = sphi 0, %s45
    %s48 = sphi 0, %s47
    %s62 = sphi 0, %s48
    %s66 = sphi 0, %s66
    %s68 = sphi 0, %s66
    %s69 = sphi 0, %s68
    %s83 = sphi 0, %s69
    %s89 = sphi 0, %s91
    %s92 = sphi 0, %s89
    %s93 = sphi 0, %s92
    %s109 = sphi 0, %s93
    %s115 = sphi 0, %s117
    %s118 = sphi 0, %s115
    %s119 = sphi 0, %s118
    %s135 = sphi 0, %s119
  $region4: #{double_conv2d.2} parent=0 // loop_header_branch
    %14 = sbr.rel (%p12) target = $region8
  $region5: #{double_conv2d.2} parent=0 // loop_body
    %s16 = ssub.s32 %s11, 1
    %s17 = ssub.s32 %s11, 2
    %s18 = sadd.s32 %s11, 1
    %s19 = ssub.s32 %s11, %s18
    %p20 = scmp.eq.s32.totalorder %s19, 0
    %s22 = sadd.s32 %s21, 1
    %s23 = scalar_select %p20, %s21, %s22
    %p26 = pneg %p20
    %p27 = scmp.eq.s32.totalorder %s11, 1
    %p28 = por %p26, %p27
    %p29 = scmp.ne.s32.totalorder %s21, %s24
    %p30 = scmp.eq.s32.totalorder %s11, 0
    %p31 = por %p29, %p30
    %p32 = scmp.ne.s32.totalorder %s21, %s24
    %p33 = scmp.eq.s32.totalorder %s16, 1
    %p34 = por %p32, %p33
    %p35 = scmp.ne.s32.totalorder %s24, %s25
    %p36 = scmp.eq.s32.totalorder %s16, 0
    %p37 = por %p35, %p36
    %p38 = scmp.ne.s32.totalorder %s24, %s25
    %p39 = scmp.eq.s32.totalorder %s17, 1
    %p40 = por %p38, %p39
    %p42 = scmp.ne.s32.totalorder %s25, %s41
    %p43 = scmp.eq.s32.totalorder %s17, 0
    %p44 = por %p42, %p43
    %s46 = sadd.s32 %s45, 1
    %p49 = scmp.eq.s32.totalorder %s11, 1
    %p50 = scmp.ne.s32.totalorder %s45, %s47
    %p51 = scmp.eq.s32.totalorder %s11, 0
    %p52 = por %p50, %p51
    %p53 = scmp.ne.s32.totalorder %s45, %s47
    %p54 = scmp.eq.s32.totalorder %s16, 1
    %p55 = por %p53, %p54
    %p56 = scmp.ne.s32.totalorder %s47, %s48
    %p57 = scmp.eq.s32.totalorder %s16, 0
    %p58 = por %p56, %p57
    %p59 = scmp.ne.s32.totalorder %s47, %s48
    %p60 = scmp.eq.s32.totalorder %s17, 1
    %p61 = por %p59, %p60
    %p63 = scmp.ne.s32.totalorder %s48, %s62
    %p64 = scmp.eq.s32.totalorder %s17, 0
    %p65 = por %p63, %p64
    %s67 = sadd.s32 %s66, 1
    %p70 = scmp.eq.s32.totalorder %s11, 1
    %p71 = scmp.ne.s32.totalorder %s66, %s68
    %p72 = scmp.eq.s32.totalorder %s11, 0
    %p73 = por %p71, %p72
    %p74 = scmp.ne.s32.totalorder %s66, %s68
    %p75 = scmp.eq.s32.totalorder %s16, 1
    %p76 = por %p74, %p75
    %p77 = scmp.ne.s32.totalorder %s68, %s69
    %p78 = scmp.eq.s32.totalorder %s16, 0
    %p79 = por %p77, %p78
    %p80 = scmp.ne.s32.totalorder %s68, %s69
    %p81 = scmp.eq.s32.totalorder %s17, 1
    %p82 = por %p80, %p81
    %p84 = scmp.ne.s32.totalorder %s69, %s83
    %p85 = scmp.eq.s32.totalorder %s17, 0
    %p86 = por %p84, %p85
    %s87 = ssub.s32 %s11, %s18
    %p88 = scmp.eq.s32.totalorder %s87, 0
    %s90 = sadd.s32 %s89, 1
    %s91 = scalar_select %p88, %s89, %s90
    %p94 = pneg %p88
    %p95 = scmp.eq.s32.totalorder %s11, 1
    %p96 = por %p94, %p95
    %p97 = scmp.ne.s32.totalorder %s89, %s92
    %p98 = scmp.eq.s32.totalorder %s11, 0
    %p99 = por %p97, %p98
    %p100 = scmp.ne.s32.totalorder %s89, %s92
    %p101 = scmp.eq.s32.totalorder %s16, 1
    %p102 = por %p100, %p101
    %p103 = scmp.ne.s32.totalorder %s92, %s93
    %p104 = scmp.eq.s32.totalorder %s16, 0
    %p105 = por %p103, %p104
    %p106 = scmp.ne.s32.totalorder %s92, %s93
    %p107 = scmp.eq.s32.totalorder %s17, 1
    %p108 = por %p106, %p107
    %p110 = scmp.ne.s32.totalorder %s93, %s109
    %p111 = scmp.eq.s32.totalorder %s17, 0
    %p112 = por %p110, %p111
    %s113 = ssub.s32 %s11, %s18
    %p114 = scmp.eq.s32.totalorder %s113, 0
    %s116 = sadd.s32 %s115, 1
    %s117 = scalar_select %p114, %s115, %s116
    %p120 = pneg %p114
    %p121 = scmp.eq.s32.totalorder %s11, 1
    %p122 = por %p120, %p121
    %p123 = scmp.ne.s32.totalorder %s115, %s118
    %p124 = scmp.eq.s32.totalorder %s11, 0
    %p125 = por %p123, %p124
    %p126 = scmp.ne.s32.totalorder %s115, %s118
    %p127 = scmp.eq.s32.totalorder %s16, 1
    %p128 = por %p126, %p127
    %p129 = scmp.ne.s32.totalorder %s118, %s119
    %p130 = scmp.eq.s32.totalorder %s16, 0
    %p131 = por %p129, %p130
    %p132 = scmp.ne.s32.totalorder %s118, %s119
    %p133 = scmp.eq.s32.totalorder %s17, 1
    %p134 = por %p132, %p133
    %p136 = scmp.ne.s32.totalorder %s119, %s135
    %p137 = scmp.eq.s32.totalorder %s17, 0
    %p138 = por %p136, %p137
    %p139 = scmp.le.s32.totalorder 1, %s11
    %p140 = scmp.lt.s32.totalorder %s11, 3
    %p141 = pnand %p139, %p140
    %p142 = pneg %p141
    // Predicated region
    $region9: #{double_conv2d.2} parent=5 // pred_check
      _
    $region10: #{double_conv2d.2} parent=5 // pred_check_branch
      %144 = sbr.rel (%p141) target = $region12
    $region11: #{double_conv2d.2} parent=5 // pred_region
      %s145 = ssub.s32 %s11, 1
      // Predicated region
      $region13: #{double_conv2d.2} parent=11 // pred_check
        %p146 = pneg %p58
      $region14: #{double_conv2d.2} parent=11 // pred_check_branch
        %148 = sbr.rel (%p146) target = $region16
      $region15: #{double_conv2d.2} parent=11 // pred_region
        _
      $region16: #{double_conv2d.2} parent=11 // pred_fallthru
        _
      // Predicated region
      $region17: #{double_conv2d.2} parent=11 // pred_check
        %p149 = pneg %p79
      $region18: #{double_conv2d.2} parent=11 // pred_check_branch
        %151 = sbr.rel (%p149) target = $region20
      $region19: #{double_conv2d.2} parent=11 // pred_region
        _
      $region20: #{double_conv2d.2} parent=11 // pred_fallthru
        _
    $region12: #{double_conv2d.2} parent=5 // pred_fallthru
      _
    %p152 = scmp.lt.s32.totalorder %s11, 2
    // Predicated region
    $region21: #{double_conv2d.2} parent=5 // pred_check
      %p153 = pneg %p152
    $region22: #{double_conv2d.2} parent=5 // pred_check_branch
      %155 = sbr.rel (%p153) target = $region24
    $region23: #{double_conv2d.2} parent=5 // pred_region
      // Predicated region
      $region25: #{double_conv2d.2} parent=23 // pred_check
        %p156 = pneg %p31
      $region26: #{double_conv2d.2} parent=23 // pred_check_branch
        %158 = sbr.rel (%p156) target = $region28
      $region27: #{double_conv2d.2} parent=23 // pred_region
        %p159 = scmp.lt.s32.totalorder %s11, 1
        %s160 = scalar_select %p159, %s11, 1
        %s161 = smul.addr %s160, 2
        %s162 = smul.addr %s161, 8
        %s163 = scalar_lea.vmem %s0, %s162
      $region28: #{double_conv2d.2} parent=23 // pred_fallthru
        _
    $region24: #{double_conv2d.2} parent=5 // pred_fallthru
      _
    %p164 = scmp.le.s32.totalorder 1, %s11
    %p165 = scmp.lt.s32.totalorder %s11, 3
    %p166 = pnand %p164, %p165
    %p167 = pneg %p166
    // Predicated region
    $region29: #{double_conv2d.2} parent=5 // pred_check
      _
    $region30: #{double_conv2d.2} parent=5 // pred_check_branch
      %169 = sbr.rel (%p166) target = $region32
    $region31: #{double_conv2d.2} parent=5 // pred_region
      %s170 = ssub.s32 %s11, 1
      %p171 = scmp.lt.s32.totalorder %s16, 1
      %s172 = scalar_select %p171, %s16, 1
      %s173 = smul.addr %s172, 2
      %s174 = smul.addr %s173, 8
      %s175 = scalar_lea.vmem %s0, %s174
      %p176 = pneg %p37
      %p177 = pneg %p34
      %p178 = pneg %p58
      %p179 = pneg %p55
      %p180 = pneg %p79
      %p181 = pneg %p76
      %p182 = pneg %p105
      %p183 = pneg %p102
      %p184 = scmp.lt.s32.totalorder %s16, 1
      %s185 = scalar_select %p184, %s16, 1
      %s186 = smul.addr %s185, 2
      %s187 = smul.addr %s186, 4
      %s188 = scalar_lea.vmem %s3, %s187
      %p189 = pneg %p131
      %p190 = pneg %p128
      %p191 = scmp.lt.s32.totalorder %s16, 1
      %s192 = scalar_select %p191, %s16, 1
      %s193 = smul.addr %s192, 2
      %s194 = scalar_lea.vmem %s4, %s193
      %p195 = scmp.lt.s32.totalorder %s16, 1
      %s196 = scalar_select %p195, %s16, 1
      %s197 = smul.addr %s196, 2
      %s198 = smul.addr %s197, 8
      %s199 = scalar_lea.vmem %s0, %s198
      %p200 = scmp.lt.s32.totalorder %s16, 1
      %s201 = scalar_select %p200, %s16, 1
      %s202 = smul.addr %s201, 2
      %s203 = smul.addr %s202, 4
      %s204 = scalar_lea.vmem %s3, %s203
      %p205 = scmp.lt.s32.totalorder %s16, 1
      %s206 = scalar_select %p205, %s16, 1
      %s207 = smul.addr %s206, 2
      %s208 = scalar_lea.vmem %s4, %s207
      %p210 = scmp.eq.s32.totalorder %s16, 0
      // Predicated region
      $region33: #{double_conv2d.2} parent=31 // pred_check
        %p211 = pneg %p210
      $region34: #{double_conv2d.2} parent=31 // pred_check_branch
        %213 = sbr.rel (%p211) target = $region36
      $region35: #{double_conv2d.2} parent=31 // pred_region
        %vm214 = vcmask 584704
        %215 = vst.msk [vmem:[#allocation2] sm:$0xf] %vm214, 0
        %216 = vst.msk [vmem:[#allocation2 + $0x4] sm:$0xf] %vm214, 0
        %vm217 = vcmask 581632
        %218 = vst.msk [vmem:[#allocation2 + $0x8] sm:$0x1] %vm217, 0
      $region36: #{double_conv2d.2} parent=31 // pred_fallthru
        _
      %v219 = vld [vmem:[%s199] sm:$0xff]
      %v220 = vld [vmem:[%s199 + $0x8] sm:$0xff]
      %v221 = vpack.c.bf16 %v219, %v219
      %v222 = vpack.c.bf16 %v220, %v220
      %vm223 = vsmask.f32 256
      %vm224 = vsmask.f32 4368
      %vm225 = vmor %vm223, %vm224
      %v227 = vshrl.u32 %v221, 16
      %v229 = vrot.slane %v227, 7
      %v230 = vshll.u32 %v221, 16
      %v232 = vor.u32 %v229, %v230
      %v233 = vrot.slane %v229, 4
      %v235 = vshrl.u32 %v222, 16
      %v237 = vrot.slane %v235, 7
      %v238 = vshll.u32 %v222, 16
      %v240 = vor.u32 %v237, %v238
      %v241 = vsel %vm225, %v233, %v240
      %v242 = vrot.slane %v237, 4
      %vm246 = vcmask 519168
      %vm247 = vsmask.f32 7938
      %vm248 = vmand %vm246, %vm247
      %v249 = vld [vmem:[#allocation2] sm:$0xf]
      %v250 = vsel %vm248, %v232, %v249
      %251 = vst [vmem:[#allocation2] sm:$0xf] %v250
      %vm252 = vcmask 519168
      %253 = vst.msk [vmem:[#allocation2 + $0x4] sm:$0xf] %vm252, %v241
      %vm254 = vcmask 516096
      %vm255 = vmand %vm254, %vm223
      %v256 = vld [vmem:[#allocation2 + $0x8] sm:$0x1]
      %v257 = vsel %vm255, %v242, %v256
      %258 = vst [vmem:[#allocation2 + $0x8] sm:$0x1] %v257
      %v259 = vld [vmem:[%s2] sm:$0x1]
      %v260 = vld [vmem:[#allocation2] sm:$0xf]
      %v261 = vld [vmem:[#allocation2 + $0x4] sm:$0xf]
      %v262 = vld [vmem:[%s1] sm:$0xf]
      %v263 = vld [vmem:[%s1 + $0x4] sm:$0xf]
      %v264 = vld [vmem:[%s1 + $0x8] sm:$0xf]
      %v265 = vld [vmem:[%s1 + $0xc] sm:$0xf]
      %v266 = vld [vmem:[%s1 + $0x10] sm:$0xf]
      %v267 = vld [vmem:[%s1 + $0x14] sm:$0xf]
      %v268 = vld [vmem:[%s1 + $0x18] sm:$0xf]
      %v269 = vld [vmem:[%s1 + $0x1c] sm:$0xf]
      %v270 = vld [vmem:[%s1 + $0x20] sm:$0xf]
      %v273 = vunpack.c.l.b16 %v260
      %v274 = vunpack.c.l.b16 %v261
      %v275 = vpack.c.b16 %v274, %v273
      %v285 = vunpack.c.l.b16 %v262
      %v286 = vunpack.c.l.b16 %v263
      %v287 = vunpack.c.l.b16 %v264
      %v288 = vunpack.c.l.b16 %v265
      %v289 = vunpack.c.l.b16 %v266
      %v290 = vunpack.c.l.b16 %v267
      %v291 = vunpack.c.l.b16 %v268
      %v292 = vunpack.c.l.b16 %v269
      %v293 = vunpack.c.l.b16 %v270
      %v294 = vpack.c.b16 %v286, %v285
      %v295 = vpack.c.b16 %v288, %v287
      %v296 = vpack.c.b16 %v290, %v289
      %v297 = vpack.c.b16 %v292, %v291
      %v298 = vpack.c.b16 %v293, %v293
      %vm303 = vcmask 588800
      %v305 = vsel %vm303, %v275, 0
      %vm307 = vcmask 1043456
      %v309 = vsel %vm307, %v298, 0
      %311 = vmatpush.bf16.msra.mxu0 0
      %312 = vmatpush.bf16.msra.mxu0 0
      %313 = vmatpush.bf16.msra.mxu0 0
      %314 = vmatpush.bf16.msra.mxu0 %v309
      %315 = vmatpush.bf16.msra.mxu0 %v297
      %316 = vmatpush.bf16.msra.mxu0 %v296
      %317 = vmatpush.bf16.msra.mxu0 %v295
      %318 = vmatpush.bf16.msra.mxu0 %v294
      %319 = vmatmul.bf16.gmra.mxu0 %v305
      %v320 = vpop.f32.mrf.mxu0
      %v321 = vadd.f32 0.0, %v320
      %v322 = vpop.f32.mrf.mxu0
      %v323 = vadd.f32 0.0, %v322
      %324 = vdwg.mxu0
      %v326 = vperm.slane %v259, 0
      %v328 = vadd.f32 %v326, %v321
      %v329 = vadd.f32 %v326, %v323
      %v330 = vld [vmem:[#allocation2] sm:$0xf]
      %v331 = vld [vmem:[#allocation2 + $0x4] sm:$0xf]
      %v332 = vld [vmem:[#allocation2 + $0x8] sm:$0x1]
      %s333 = scalar_lea.vmem %s1, 36
      %v334 = vld [vmem:[%s333] sm:$0xf]
      %v335 = vld [vmem:[%s333 + $0x4] sm:$0xf]
      %v336 = vld [vmem:[%s333 + $0x8] sm:$0xf]
      %v337 = vld [vmem:[%s333 + $0xc] sm:$0xf]
      %v338 = vld [vmem:[%s333 + $0x10] sm:$0xf]
      %v339 = vld [vmem:[%s333 + $0x14] sm:$0xf]
      %v340 = vld [vmem:[%s333 + $0x18] sm:$0xf]
      %v341 = vld [vmem:[%s333 + $0x1c] sm:$0xf]
      %v342 = vld [vmem:[%s333 + $0x20] sm:$0xf]
      %v346 = vunpack.c.l.b16 %v330
      %v347 = vunpack.c.l.b16 %v331
      %v348 = vunpack.c.l.b16 %v332
      %v349 = vpack.c.b16 %v347, %v346
      %v350 = vpack.c.b16 %v348, %v348
      %vm351 = vsmask.f32 7424
      %v353 = vshrl.u32 %v349, 16
      %v355 = vshll.u32 %v349, 16
      %v357 = vrot.slane %v355, 1
      %v358 = vor.u32 %v353, %v357
      %v360 = vshll.u32 %v350, 16
      %v362 = vrot.slane %v360, 1
      %v363 = vsel %vm351, %v358, %v362
      %v373 = vunpack.c.l.b16 %v334
      %v374 = vunpack.c.l.b16 %v335
      %v375 = vunpack.c.l.b16 %v336
      %v376 = vunpack.c.l.b16 %v337
      %v377 = vunpack.c.l.b16 %v338
      %v378 = vunpack.c.l.b16 %v339
      %v379 = vunpack.c.l.b16 %v340
      %v380 = vunpack.c.l.b16 %v341
      %v381 = vunpack.c.l.b16 %v342
      %v382 = vpack.c.b16 %v374, %v373
      %v383 = vpack.c.b16 %v376, %v375
      %v384 = vpack.c.b16 %v378, %v377
      %v385 = vpack.c.b16 %v380, %v379
      %v386 = vpack.c.b16 %v381, %v381
      %v392 = vsel %vm303, %v363, 0
      %v395 = vsel %vm307, %v386, 0
      %397 = vmatpush.bf16.msra.mxu0 0
      %398 = vmatpush.bf16.msra.mxu0 0
      %399 = vmatpush.bf16.msra.mxu0 0
      %400 = vmatpush.bf16.msra.mxu0 %v395
      %401 = vmatpush.bf16.msra.mxu0 %v385
      %402 = vmatpush.bf16.msra.mxu0 %v384
      %403 = vmatpush.bf16.msra.mxu0 %v383
      %404 = vmatpush.bf16.msra.mxu0 %v382
      %405 = vmatmul.bf16.gmra.mxu0 %v392
      %v406 = vpop.f32.mrf.mxu0
      %v407 = vadd.f32 0.0, %v406
      %v408 = vpop.f32.mrf.mxu0
      %v409 = vadd.f32 0.0, %v408
      %410 = vdwg.mxu0
      %v411 = vadd.f32 %v328, %v407
      %v412 = vadd.f32 %v329, %v409
      %v413 = vld [vmem:[#allocation2] sm:$0xe]
      %s414 = scalar_lea.vmem %s1, 72
      %v415 = vld [vmem:[%s414] sm:$0xf]
      %v416 = vld [vmem:[%s414 + $0x4] sm:$0xf]
      %v417 = vld [vmem:[%s414 + $0x8] sm:$0xf]
      %v418 = vld [vmem:[%s414 + $0xc] sm:$0xf]
      %v419 = vld [vmem:[%s414 + $0x10] sm:$0xf]
      %v420 = vld [vmem:[%s414 + $0x14] sm:$0xf]
      %v421 = vld [vmem:[%s414 + $0x18] sm:$0xf]
      %v422 = vld [vmem:[%s414 + $0x1c] sm:$0xf]
      %v423 = vld [vmem:[%s414 + $0x20] sm:$0xf]
      %v425 = vunpack.c.l.b16 %v413
      %v426 = vpack.c.b16 %v347, %v425
      %vm427 = vcmask 1046528
      %v428 = vrot.slane %v426, 1
      %v429 = vrot.slane %v350, 1
      %v430 = vsel %vm427, %v428, %v429
      %v440 = vunpack.c.l.b16 %v415
      %v441 = vunpack.c.l.b16 %v416
      %v442 = vunpack.c.l.b16 %v417
      %v443 = vunpack.c.l.b16 %v418
      %v444 = vunpack.c.l.b16 %v419
      %v445 = vunpack.c.l.b16 %v420
      %v446 = vunpack.c.l.b16 %v421
      %v447 = vunpack.c.l.b16 %v422
      %v448 = vunpack.c.l.b16 %v423
      %v449 = vpack.c.b16 %v441, %v440
      %v450 = vpack.c.b16 %v443, %v442
      %v451 = vpack.c.b16 %v445, %v444
      %v452 = vpack.c.b16 %v447, %v446
      %v453 = vpack.c.b16 %v448, %v448
      %v459 = vsel %vm303, %v430, 0
      %v462 = vsel %vm307, %v453, 0
      %464 = vmatpush.bf16.msra.mxu0 0
      %465 = vmatpush.bf16.msra.mxu0 0
      %466 = vmatpush.bf16.msra.mxu0 0
      %467 = vmatpush.bf16.msra.mxu0 %v462
      %468 = vmatpush.bf16.msra.mxu0 %v452
      %469 = vmatpush.bf16.msra.mxu0 %v451
      %470 = vmatpush.bf16.msra.mxu0 %v450
      %471 = vmatpush.bf16.msra.mxu0 %v449
      %472 = vmatmul.bf16.gmra.mxu0 %v459
      %v473 = vpop.f32.mrf.mxu0
      %v474 = vadd.f32 0.0, %v473
      %v475 = vpop.f32.mrf.mxu0
      %v476 = vadd.f32 0.0, %v475
      %477 = vdwg.mxu0
      %v478 = vadd.f32 %v411, %v474
      %v479 = vadd.f32 %v412, %v476
      %v480 = vpack.c.bf16 %v478, %v478
      %v481 = vpack.c.bf16 %v479, %v479
      %482 = vst [vmem:[%s204] sm:$0xf] %v480
      %483 = vst [vmem:[%s204 + $0x4] sm:$0xf] %v481
      %v484 = vadd.f32 %v478, %v479
      %v485 = vrot.slane %v484, 4
      %v486 = vadd.f32 %v484, %v485
      %v487 = vrot.slane %v486, 2
      %v488 = vadd.f32 %v486, %v487
      %v489 = vrot.slane %v488, 1
      %v490 = vadd.f32 %v488, %v489
      %v491 = vrcp.pop 16.0
      %v492 = vmul.f32 16.0, %v491
      %v493 = vsub.f32 1.0, %v492
      %v494 = vmul.f32 %v491, %v493
      %v495 = vadd.f32 %v491, %v494
      %vm496 = vweird.f32 %v491
      %v497 = vsel %vm496, %v491, %v495
      %v498 = vmul.f32 %v490, %v497
      %499 = vst [vmem:[%s208] sm:$0x1] %v498
      %v500 = vsub.f32 %v478, %v498
      %v501 = vsub.f32 %v479, %v498
      %v502 = vmul.f32 %v500, %v500
      %v503 = vmul.f32 %v501, %v501
      %v504 = vadd.f32 %v502, %v503
      %v505 = vrot.slane %v504, 4
      %v506 = vadd.f32 %v504, %v505
      %v507 = vrot.slane %v506, 2
      %v508 = vadd.f32 %v506, %v507
      %v509 = vrot.slane %v508, 1
      %v510 = vadd.f32 %v508, %v509
      %511 = vst [vmem:[%s208 + $0x1] sm:$0x1] %v510
      %p512 = scmp.lt.s32.totalorder %s16, 1
      %s513 = scalar_select %p512, %s16, 1
      %s514 = smul.addr %s513, 2
      %s515 = smul.addr %s514, 4
      %s516 = scalar_lea.vmem %s3, %s515
      %p517 = scmp.lt.s32.totalorder %s16, 1
      %s518 = scalar_select %p517, %s16, 1
      %s519 = smul.addr %s518, 2
      %s520 = scalar_lea.vmem %s4, %s519
      // Predicated region
      $region37: #{double_conv2d.2} parent=31 // pred_check
        %p521 = pneg %p102
      $region38: #{double_conv2d.2} parent=31 // pred_check_branch
        %523 = sbr.rel (%p521) target = $region40
      $region39: #{double_conv2d.2} parent=31 // pred_region
        _
      $region40: #{double_conv2d.2} parent=31 // pred_fallthru
        _
      // Predicated region
      $region41: #{double_conv2d.2} parent=31 // pred_check
        %p524 = pneg %p128
      $region42: #{double_conv2d.2} parent=31 // pred_check_branch
        %526 = sbr.rel (%p524) target = $region44
      $region43: #{double_conv2d.2} parent=31 // pred_region
        _
      $region44: #{double_conv2d.2} parent=31 // pred_fallthru
        _
    $region32: #{double_conv2d.2} parent=5 // pred_fallthru
      _
    %p527 = scmp.le.s32.totalorder 2, %s11
    // Predicated region
    $region45: #{double_conv2d.2} parent=5 // pred_check
      %p528 = pneg %p527
    $region46: #{double_conv2d.2} parent=5 // pred_check_branch
      %530 = sbr.rel (%p528) target = $region48
    $region47: #{double_conv2d.2} parent=5 // pred_region
      %s531 = ssub.s32 %s11, 2
      // Predicated region
      $region49: #{double_conv2d.2} parent=47 // pred_check
        %p532 = pneg %p108
      $region50: #{double_conv2d.2} parent=47 // pred_check_branch
        %534 = sbr.rel (%p532) target = $region52
      $region51: #{double_conv2d.2} parent=47 // pred_region
        %p535 = scmp.lt.s32.totalorder %s17, 1
        %s536 = scalar_select %p535, %s17, 1
        %s537 = smul.addr %s536, 2
        %s538 = smul.addr %s537, 4
        %s539 = scalar_lea.vmem %s3, %s538
      $region52: #{double_conv2d.2} parent=47 // pred_fallthru
        _
      // Predicated region
      $region53: #{double_conv2d.2} parent=47 // pred_check
        %p540 = pneg %p134
      $region54: #{double_conv2d.2} parent=47 // pred_check_branch
        %542 = sbr.rel (%p540) target = $region56
      $region55: #{double_conv2d.2} parent=47 // pred_region
        %p543 = scmp.lt.s32.totalorder %s17, 1
        %s544 = scalar_select %p543, %s17, 1
        %s545 = smul.addr %s544, 2
        %s546 = scalar_lea.vmem %s4, %s545
      $region56: #{double_conv2d.2} parent=47 // pred_fallthru
        _
    $region48: #{double_conv2d.2} parent=5 // pred_fallthru
      _
  $region6: #{double_conv2d.2} parent=0 // loop_footer
    %s15 = sadd.s32 1, %s11
  $region7: #{double_conv2d.2} parent=0 // loop_footer_branch
    %10 = sbr.rel target = $region3
  $region8: #{double_conv2d.2} parent=0 // loop_exit
    _

// kernel: double_conv2d.3
$region0: #{double_conv2d.3}
  #allocation0 [shape = 'u32[]', space=smem, size = 0x4, offset = 0x4, fixed_abs, tag = 'smem constant byte address 0x4 - core index']
  #allocation1 [shape = 'u32[72,128]{1,0:T(1,128)}', space=vmem, size = 0x9000, scoped, tag = 'internal scratch']
  #allocation2 [shape = 'bf16[18,144]{1,0:T(8,128)(2,1)}', space=vmem, size = 0x3000, scoped, tag = 'scratch operand']
  %s0 = inlined_call_operand.vmem [shape: bf16[2,16,128], index: 0, kind: input, shape index: {}]
  %s1 = inlined_call_operand.vmem [shape: f32[1,128], index: 1, kind: input, shape index: {}]
  %s2 = inlined_call_operand.vmem [shape: f32[1,128], index: 2, kind: input, shape index: {}]
  %s3 = inlined_call_operand.vmem [shape: bf16[3,144,128], index: 3, kind: input, shape index: {}]
  %s4 = inlined_call_operand.vmem [shape: f32[1,128], index: 4, kind: input, shape index: {}]
  %s5 = inlined_call_operand.vmem [shape: bf16[2,16,128], index: 5, kind: output, shape index: {0}]
  %s6 = inlined_call_operand.vmem [shape: f32[2,2,128], index: 6, kind: output, shape index: {1}]
  %7 = xla_tuple %s5, %s6
  %s8 = sld [smem:[#allocation0]]
  $region65: #{double_conv2d.3} parent=0
    _
  %s10 = ssub.s32 1, %s8
  %s11 = scalar_select 0, %s10, %s8
  loop: start=0, step=1, limit=4
  $region2: #{double_conv2d.3} parent=0 // loop_pre_header
    _
  $region3: #{double_conv2d.3} parent=0 // loop_header
    %s13 = sphi 0, %s17
    %p14 = scmp.ge.s32.totalorder %s13, 4
    %s23 = sphi 0, %s25
    %s26 = sphi 0, %s23
    %s27 = sphi 0, %s26
    %s43 = sphi 0, %s27
    %s47 = sphi 0, %s47
    %s49 = sphi 0, %s47
    %s50 = sphi 0, %s49
    %s64 = sphi 0, %s50
    %s68 = sphi 0, %s68
    %s70 = sphi 0, %s68
    %s71 = sphi 0, %s70
    %s85 = sphi 0, %s71
    %s89 = sphi 0, %s89
    %s91 = sphi 0, %s89
    %s92 = sphi 0, %s91
    %s106 = sphi 0, %s92
    %s110 = sphi 0, %s110
    %s112 = sphi 0, %s110
    %s113 = sphi 0, %s112
    %s127 = sphi 0, %s113
    %s133 = sphi 0, %s135
    %s136 = sphi 0, %s133
    %s137 = sphi 0, %s136
    %s153 = sphi 0, %s137
    %s159 = sphi 0, %s161
    %s162 = sphi 0, %s159
    %s163 = sphi 0, %s162
    %s179 = sphi 0, %s163
  $region4: #{double_conv2d.3} parent=0 // loop_header_branch
    %16 = sbr.rel (%p14) target = $region8
  $region5: #{double_conv2d.3} parent=0 // loop_body
    %s18 = ssub.s32 %s13, 1
    %s19 = ssub.s32 %s13, 2
    %s20 = sadd.s32 %s13, 1
    %s21 = ssub.s32 %s13, %s20
    %p22 = scmp.eq.s32.totalorder %s21, 0
    %s24 = sadd.s32 %s23, 1
    %s25 = scalar_select %p22, %s23, %s24
    %p28 = pneg %p22
    %p29 = scmp.eq.s32.totalorder %s13, 1
    %p30 = por %p28, %p29
    %p31 = scmp.ne.s32.totalorder %s23, %s26
    %p32 = scmp.eq.s32.totalorder %s13, 0
    %p33 = por %p31, %p32
    %p34 = scmp.ne.s32.totalorder %s23, %s26
    %p35 = scmp.eq.s32.totalorder %s18, 1
    %p36 = por %p34, %p35
    %p37 = scmp.ne.s32.totalorder %s26, %s27
    %p38 = scmp.eq.s32.totalorder %s18, 0
    %p39 = por %p37, %p38
    %p40 = scmp.ne.s32.totalorder %s26, %s27
    %p41 = scmp.eq.s32.totalorder %s19, 1
    %p42 = por %p40, %p41
    %p44 = scmp.ne.s32.totalorder %s27, %s43
    %p45 = scmp.eq.s32.totalorder %s19, 0
    %p46 = por %p44, %p45
    %s48 = sadd.s32 %s47, 1
    %p51 = scmp.eq.s32.totalorder %s13, 1
    %p52 = scmp.ne.s32.totalorder %s47, %s49
    %p53 = scmp.eq.s32.totalorder %s13, 0
    %p54 = por %p52, %p53
    %p55 = scmp.ne.s32.totalorder %s47, %s49
    %p56 = scmp.eq.s32.totalorder %s18, 1
    %p57 = por %p55, %p56
    %p58 = scmp.ne.s32.totalorder %s49, %s50
    %p59 = scmp.eq.s32.totalorder %s18, 0
    %p60 = por %p58, %p59
    %p61 = scmp.ne.s32.totalorder %s49, %s50
    %p62 = scmp.eq.s32.totalorder %s19, 1
    %p63 = por %p61, %p62
    %p65 = scmp.ne.s32.totalorder %s50, %s64
    %p66 = scmp.eq.s32.totalorder %s19, 0
    %p67 = por %p65, %p66
    %s69 = sadd.s32 %s68, 1
    %p72 = scmp.eq.s32.totalorder %s13, 1
    %p73 = scmp.ne.s32.totalorder %s68, %s70
    %p74 = scmp.eq.s32.totalorder %s13, 0
    %p75 = por %p73, %p74
    %p76 = scmp.ne.s32.totalorder %s68, %s70
    %p77 = scmp.eq.s32.totalorder %s18, 1
    %p78 = por %p76, %p77
    %p79 = scmp.ne.s32.totalorder %s70, %s71
    %p80 = scmp.eq.s32.totalorder %s18, 0
    %p81 = por %p79, %p80
    %p82 = scmp.ne.s32.totalorder %s70, %s71
    %p83 = scmp.eq.s32.totalorder %s19, 1
    %p84 = por %p82, %p83
    %p86 = scmp.ne.s32.totalorder %s71, %s85
    %p87 = scmp.eq.s32.totalorder %s19, 0
    %p88 = por %p86, %p87
    %s90 = sadd.s32 %s89, 1
    %p93 = scmp.eq.s32.totalorder %s13, 1
    %p94 = scmp.ne.s32.totalorder %s89, %s91
    %p95 = scmp.eq.s32.totalorder %s13, 0
    %p96 = por %p94, %p95
    %p97 = scmp.ne.s32.totalorder %s89, %s91
    %p98 = scmp.eq.s32.totalorder %s18, 1
    %p99 = por %p97, %p98
    %p100 = scmp.ne.s32.totalorder %s91, %s92
    %p101 = scmp.eq.s32.totalorder %s18, 0
    %p102 = por %p100, %p101
    %p103 = scmp.ne.s32.totalorder %s91, %s92
    %p104 = scmp.eq.s32.totalorder %s19, 1
    %p105 = por %p103, %p104
    %p107 = scmp.ne.s32.totalorder %s92, %s106
    %p108 = scmp.eq.s32.totalorder %s19, 0
    %p109 = por %p107, %p108
    %s111 = sadd.s32 %s110, 1
    %p114 = scmp.eq.s32.totalorder %s13, 1
    %p115 = scmp.ne.s32.totalorder %s110, %s112
    %p116 = scmp.eq.s32.totalorder %s13, 0
    %p117 = por %p115, %p116
    %p118 = scmp.ne.s32.totalorder %s110, %s112
    %p119 = scmp.eq.s32.totalorder %s18, 1
    %p120 = por %p118, %p119
    %p121 = scmp.ne.s32.totalorder %s112, %s113
    %p122 = scmp.eq.s32.totalorder %s18, 0
    %p123 = por %p121, %p122
    %p124 = scmp.ne.s32.totalorder %s112, %s113
    %p125 = scmp.eq.s32.totalorder %s19, 1
    %p126 = por %p124, %p125
    %p128 = scmp.ne.s32.totalorder %s113, %s127
    %p129 = scmp.eq.s32.totalorder %s19, 0
    %p130 = por %p128, %p129
    %s131 = ssub.s32 %s13, %s20
    %p132 = scmp.eq.s32.totalorder %s131, 0
    %s134 = sadd.s32 %s133, 1
    %s135 = scalar_select %p132, %s133, %s134
    %p138 = pneg %p132
    %p139 = scmp.eq.s32.totalorder %s13, 1
    %p140 = por %p138, %p139
    %p141 = scmp.ne.s32.totalorder %s133, %s136
    %p142 = scmp.eq.s32.totalorder %s13, 0
    %p143 = por %p141, %p142
    %p144 = scmp.ne.s32.totalorder %s133, %s136
    %p145 = scmp.eq.s32.totalorder %s18, 1
    %p146 = por %p144, %p145
    %p147 = scmp.ne.s32.totalorder %s136, %s137
    %p148 = scmp.eq.s32.totalorder %s18, 0
    %p149 = por %p147, %p148
    %p150 = scmp.ne.s32.totalorder %s136, %s137
    %p151 = scmp.eq.s32.totalorder %s19, 1
    %p152 = por %p150, %p151
    %p154 = scmp.ne.s32.totalorder %s137, %s153
    %p155 = scmp.eq.s32.totalorder %s19, 0
    %p156 = por %p154, %p155
    %s157 = ssub.s32 %s13, %s20
    %p158 = scmp.eq.s32.totalorder %s157, 0
    %s160 = sadd.s32 %s159, 1
    %s161 = scalar_select %p158, %s159, %s160
    %p164 = pneg %p158
    %p165 = scmp.eq.s32.totalorder %s13, 1
    %p166 = por %p164, %p165
    %p167 = scmp.ne.s32.totalorder %s159, %s162
    %p168 = scmp.eq.s32.totalorder %s13, 0
    %p169 = por %p167, %p168
    %p170 = scmp.ne.s32.totalorder %s159, %s162
    %p171 = scmp.eq.s32.totalorder %s18, 1
    %p172 = por %p170, %p171
    %p173 = scmp.ne.s32.totalorder %s162, %s163
    %p174 = scmp.eq.s32.totalorder %s18, 0
    %p175 = por %p173, %p174
    %p176 = scmp.ne.s32.totalorder %s162, %s163
    %p177 = scmp.eq.s32.totalorder %s19, 1
    %p178 = por %p176, %p177
    %p180 = scmp.ne.s32.totalorder %s163, %s179
    %p181 = scmp.eq.s32.totalorder %s19, 0
    %p182 = por %p180, %p181
    %p183 = scmp.le.s32.totalorder 1, %s13
    %p184 = scmp.lt.s32.totalorder %s13, 3
    %p185 = pnand %p183, %p184
    %p186 = pneg %p185
    // Predicated region
    $region9: #{double_conv2d.3} parent=5 // pred_check
      _
    $region10: #{double_conv2d.3} parent=5 // pred_check_branch
      %188 = sbr.rel (%p185) target = $region12
    $region11: #{double_conv2d.3} parent=5 // pred_region
      %s189 = ssub.s32 %s13, 1
      // Predicated region
      $region13: #{double_conv2d.3} parent=11 // pred_check
        %p190 = pneg %p60
      $region14: #{double_conv2d.3} parent=11 // pred_check_branch
        %192 = sbr.rel (%p190) target = $region16
      $region15: #{double_conv2d.3} parent=11 // pred_region
        _
      $region16: #{double_conv2d.3} parent=11 // pred_fallthru
        _
      // Predicated region
      $region17: #{double_conv2d.3} parent=11 // pred_check
        %p193 = pneg %p81
      $region18: #{double_conv2d.3} parent=11 // pred_check_branch
        %195 = sbr.rel (%p193) target = $region20
      $region19: #{double_conv2d.3} parent=11 // pred_region
        _
      $region20: #{double_conv2d.3} parent=11 // pred_fallthru
        _
      // Predicated region
      $region21: #{double_conv2d.3} parent=11 // pred_check
        %p196 = pneg %p102
      $region22: #{double_conv2d.3} parent=11 // pred_check_branch
        %198 = sbr.rel (%p196) target = $region24
      $region23: #{double_conv2d.3} parent=11 // pred_region
        _
      $region24: #{double_conv2d.3} parent=11 // pred_fallthru
        _
      // Predicated region
      $region25: #{double_conv2d.3} parent=11 // pred_check
        %p199 = pneg %p123
      $region26: #{double_conv2d.3} parent=11 // pred_check_branch
        %201 = sbr.rel (%p199) target = $region28
      $region27: #{double_conv2d.3} parent=11 // pred_region
        _
      $region28: #{double_conv2d.3} parent=11 // pred_fallthru
        _
    $region12: #{double_conv2d.3} parent=5 // pred_fallthru
      _
    %p202 = scmp.lt.s32.totalorder %s13, 2
    // Predicated region
    $region29: #{double_conv2d.3} parent=5 // pred_check
      %p203 = pneg %p202
    $region30: #{double_conv2d.3} parent=5 // pred_check_branch
      %205 = sbr.rel (%p203) target = $region32
    $region31: #{double_conv2d.3} parent=5 // pred_region
      // Predicated region
      $region33: #{double_conv2d.3} parent=31 // pred_check
        %p206 = pneg %p33
      $region34: #{double_conv2d.3} parent=31 // pred_check_branch
        %208 = sbr.rel (%p206) target = $region36
      $region35: #{double_conv2d.3} parent=31 // pred_region
        %p209 = scmp.lt.s32.totalorder %s13, 1
        %s210 = scalar_select %p209, %s13, 1
        %s211 = smul.addr %s210, 2
        %s212 = smul.addr %s211, 4
        %s213 = scalar_lea.vmem %s0, %s212
      $region36: #{double_conv2d.3} parent=31 // pred_fallthru
        _
    $region32: #{double_conv2d.3} parent=5 // pred_fallthru
      _
    %p214 = scmp.le.s32.totalorder 1, %s13
    %p215 = scmp.lt.s32.totalorder %s13, 3
    %p216 = pnand %p214, %p215
    %p217 = pneg %p216
    // Predicated region
    $region37: #{double_conv2d.3} parent=5 // pred_check
      _
    $region38: #{double_conv2d.3} parent=5 // pred_check_branch
      %219 = sbr.rel (%p216) target = $region40
    $region39: #{double_conv2d.3} parent=5 // pred_region
      %s220 = ssub.s32 %s13, 1
      %p221 = scmp.lt.s32.totalorder %s18, 1
      %s222 = scalar_select %p221, %s18, 1
      %s223 = smul.addr %s222, 2
      %s224 = smul.addr %s223, 4
      %s225 = scalar_lea.vmem %s0, %s224
      %p226 = pneg %p39
      %p227 = pneg %p36
      %p228 = pneg %p60
      %p229 = pneg %p57
      %p230 = pneg %p81
      %p231 = pneg %p78
      %p232 = pneg %p102
      %p233 = pneg %p99
      %p234 = pneg %p123
      %p235 = pneg %p120
      %p236 = pneg %p149
      %p237 = pneg %p146
      %p238 = scmp.lt.s32.totalorder %s18, 1
      %s239 = scalar_select %p238, %s18, 1
      %s240 = smul.addr %s239, 2
      %s241 = smul.addr %s240, 4
      %s242 = scalar_lea.vmem %s5, %s241
      %p243 = pneg %p175
      %p244 = pneg %p172
      %p245 = scmp.lt.s32.totalorder %s18, 1
      %s246 = scalar_select %p245, %s18, 1
      %s247 = smul.addr %s246, 2
      %s248 = scalar_lea.vmem %s6, %s247
      %p249 = scmp.lt.s32.totalorder %s18, 1
      %s250 = scalar_select %p249, %s18, 1
      %s251 = smul.addr %s250, 2
      %s252 = smul.addr %s251, 4
      %s253 = scalar_lea.vmem %s0, %s252
      %p254 = scmp.lt.s32.totalorder %s18, 1
      %s255 = scalar_select %p254, %s18, 1
      %s256 = smul.addr %s255, 2
      %s257 = smul.addr %s256, 4
      %s258 = scalar_lea.vmem %s5, %s257
      %p259 = scmp.lt.s32.totalorder %s18, 1
      %s260 = scalar_select %p259, %s18, 1
      %s261 = smul.addr %s260, 2
      %s262 = scalar_lea.vmem %s6, %s261
      %p264 = scmp.eq.s32.totalorder %s18, 0
      // Predicated region
      $region41: #{double_conv2d.3} parent=39 // pred_check
        %p265 = pneg %p264
      $region42: #{double_conv2d.3} parent=39 // pred_check_branch
        %267 = sbr.rel (%p265) target = $region44
      $region43: #{double_conv2d.3} parent=39 // pred_region
        %vm268 = vcmask 1043456
        %vm269 = vcmask 130052
        %vm270 = vmor %vm269, %vm268
        %271 = vst.msk [vmem:[#allocation2] sm:$0xff] %vm270, 0
        %272 = vst.msk [vmem:[#allocation2 + $0x8] sm:$0xff] %vm270, 0
        %vm273 = vcmask 1040384
        %vm274 = vcmask 126980
        %vm275 = vmor %vm274, %vm273
        %276 = vst.msk [vmem:[#allocation2 + $0x10] sm:$0x11] %vm275, 0
      $region44: #{double_conv2d.3} parent=39 // pred_fallthru
        _
      %v277 = vld [vmem:[%s253] sm:$0xf]
      %v278 = vld [vmem:[%s253 + $0x4] sm:$0xf]
      %v279 = vunpack.c.l.bf16 %v277
      %v280 = vunpack.c.l.bf16 %v278
      %v281 = vld [vmem:[%s1] sm:$0x1]
      %v283 = vperm.slane %v281, 0
      %v285 = vmul.f32 %v279, %v283
      %v286 = vmul.f32 %v280, %v283
      %v287 = vld [vmem:[%s2] sm:$0x1]
      %v289 = vperm.slane %v287, 0
      %v291 = vadd.f32 %v285, %v289
      %v292 = vadd.f32 %v286, %v289
      %v293 = vmax.f32 %v291, 0.0
      %v294 = vmax.f32 %v292, 0.0
      %v295 = vpack.c.bf16 %v293, %v293
      %v296 = vpack.c.bf16 %v294, %v294
      %vm297 = vsmask.f32 256
      %vm298 = vsmask.f32 4368
      %vm299 = vmor %vm297, %vm298
      %v301 = vshrl.u32 %v295, 16
      %v303 = vrot.slane %v301, 7
      %v304 = vshll.u32 %v295, 16
      %v306 = vor.u32 %v303, %v304
      %v307 = vrot.slane %v303, 4
      %v309 = vshrl.u32 %v296, 16
      %v311 = vrot.slane %v309, 7
      %v312 = vshll.u32 %v296, 16
      %v314 = vor.u32 %v311, %v312
      %v315 = vsel %vm299, %v307, %v314
      %v316 = vrot.slane %v311, 4
      %vm320 = vcmask 1043456
      %vm321 = vsmask.f32 7938
      %vm322 = vmand %vm320, %vm321
      %v323 = vld [vmem:[#allocation2] sm:$0xf]
      %v324 = vsel %vm322, %v306, %v323
      %325 = vst [vmem:[#allocation2] sm:$0xf] %v324
      %326 = vst [vmem:[#allocation2 + $0x8] sm:$0xf] %v315
      %vm327 = vcmask 1040384
      %vm328 = vmand %vm327, %vm297
      %v329 = vld [vmem:[#allocation2 + $0x10] sm:$0x1]
      %v330 = vsel %vm328, %v316, %v329
      %331 = vst [vmem:[#allocation2 + $0x10] sm:$0x1] %v330
      %v332 = vld [vmem:[%s4] sm:$0x1]
      %v333 = vld [vmem:[#allocation2] sm:$0xff]
      %v334 = vld [vmem:[#allocation2 + $0x8] sm:$0xff]
      %v335 = vld [vmem:[%s3] sm:$0xf]
      %v336 = vld [vmem:[%s3 + $0x4] sm:$0xf]
      %v337 = vld [vmem:[%s3 + $0x8] sm:$0xf]
      %v338 = vld [vmem:[%s3 + $0xc] sm:$0xf]
      %v339 = vld [vmem:[%s3 + $0x10] sm:$0xf]
      %v340 = vld [vmem:[%s3 + $0x14] sm:$0xf]
      %v341 = vld [vmem:[%s3 + $0x18] sm:$0xf]
      %v342 = vld [vmem:[%s3 + $0x1c] sm:$0xf]
      %v343 = vld [vmem:[%s3 + $0x20] sm:$0xf]
      %v344 = vld [vmem:[%s3 + $0x24] sm:$0xf]
      %v345 = vld [vmem:[%s3 + $0x28] sm:$0xf]
      %v346 = vld [vmem:[%s3 + $0x2c] sm:$0xf]
      %v347 = vld [vmem:[%s3 + $0x30] sm:$0xf]
      %v348 = vld [vmem:[%s3 + $0x34] sm:$0xf]
      %v349 = vld [vmem:[%s3 + $0x38] sm:$0xf]
      %v350 = vld [vmem:[%s3 + $0x3c] sm:$0xf]
      %v351 = vld [vmem:[%s3 + $0x40] sm:$0xf]
      %v352 = vld [vmem:[%s3 + $0x44] sm:$0xf]
      %v355 = vunpack.c.l.b16 %v333
      %v356 = vunpack.c.h.b16 %v333
      %v357 = vunpack.c.l.b16 %v334
      %v358 = vunpack.c.h.b16 %v334
      %v359 = vpack.c.b16 %v357, %v355
      %v360 = vpack.c.b16 %v358, %v356
      %v380 = vunpack.c.l.b16 %v335
      %v381 = vunpack.c.l.b16 %v336
      %v382 = vunpack.c.l.b16 %v337
      %v383 = vunpack.c.l.b16 %v338
      %v384 = vunpack.c.l.b16 %v339
      %v385 = vunpack.c.l.b16 %v340
      %v386 = vunpack.c.l.b16 %v341
      %v387 = vunpack.c.l.b16 %v342
      %v388 = vunpack.c.l.b16 %v343
      %v389 = vunpack.c.l.b16 %v344
      %v390 = vunpack.c.l.b16 %v345
      %v391 = vunpack.c.l.b16 %v346
      %v392 = vunpack.c.l.b16 %v347
      %v393 = vunpack.c.l.b16 %v348
      %v394 = vunpack.c.l.b16 %v349
      %v395 = vunpack.c.l.b16 %v350
      %v396 = vunpack.c.l.b16 %v351
      %v397 = vunpack.c.l.b16 %v352
      %v398 = vpack.c.b16 %v381, %v380
      %v399 = vpack.c.b16 %v383, %v382
      %v400 = vpack.c.b16 %v385, %v384
      %v401 = vpack.c.b16 %v387, %v386
      %v402 = vpack.c.b16 %v389, %v388
      %v403 = vpack.c.b16 %v391, %v390
      %v404 = vpack.c.b16 %v393, %v392
      %v405 = vpack.c.b16 %v395, %v394
      %v406 = vpack.c.b16 %v397, %v396
      %vm416 = vcmask 130048
      %v418 = vsel %vm416, %v360, 0
      %420 = vmatpush.bf16.msra.mxu0 %v405
      %421 = vmatpush.bf16.msra.mxu0 %v404
      %422 = vmatpush.bf16.msra.mxu0 %v403
      %423 = vmatpush.bf16.msra.mxu0 %v402
      %424 = vmatpush.bf16.msra.mxu0 %v401
      %425 = vmatpush.bf16.msra.mxu0 %v400
      %426 = vmatpush.bf16.msra.mxu0 %v399
      %427 = vmatpush.bf16.msra.mxu0 %v398
      %428 = vmatmul.bf16.gmra.mxu0 %v359
      %v429 = vpop.f32.mrf.mxu0
      %v430 = vadd.f32 0.0, %v429
      %v431 = vpop.f32.mrf.mxu0
      %v432 = vadd.f32 0.0, %v431
      %433 = vdwg.mxu0
      %434 = vmatpush.bf16.msra.mxu0 0
      %435 = vmatpush.bf16.msra.mxu0 0
      %436 = vmatpush.bf16.msra.mxu0 0
      %437 = vmatpush.bf16.msra.mxu0 0
      %438 = vmatpush.bf16.msra.mxu0 0
      %439 = vmatpush.bf16.msra.mxu0 0
      %440 = vmatpush.bf16.msra.mxu0 0
      %441 = vmatpush.bf16.msra.mxu0 %v406
      %442 = vmatmul.bf16.gmra.mxu0 %v418
      %v443 = vpop.f32.mrf.mxu0
      %v444 = vadd.f32 %v430, %v443
      %v445 = vpop.f32.mrf.mxu0
      %v446 = vadd.f32 %v432, %v445
      %447 = vdwg.mxu0
      %v449 = vperm.slane %v332, 0
      %v451 = vadd.f32 %v449, %v444
      %v452 = vadd.f32 %v449, %v446
      %v453 = vld [vmem:[#allocation2] sm:$0xff]
      %v454 = vld [vmem:[#allocation2 + $0x8] sm:$0xff]
      %v455 = vld [vmem:[#allocation2 + $0x10] sm:$0x11]
      %s456 = scalar_lea.vmem %s3, 72
      %v457 = vld [vmem:[%s456] sm:$0xf]
      %v458 = vld [vmem:[%s456 + $0x4] sm:$0xf]
      %v459 = vld [vmem:[%s456 + $0x8] sm:$0xf]
      %v460 = vld [vmem:[%s456 + $0xc] sm:$0xf]
      %v461 = vld [vmem:[%s456 + $0x10] sm:$0xf]
      %v462 = vld [vmem:[%s456 + $0x14] sm:$0xf]
      %v463 = vld [vmem:[%s456 + $0x18] sm:$0xf]
      %v464 = vld [vmem:[%s456 + $0x1c] sm:$0xf]
      %v465 = vld [vmem:[%s456 + $0x20] sm:$0xf]
      %v466 = vld [vmem:[%s456 + $0x24] sm:$0xf]
      %v467 = vld [vmem:[%s456 + $0x28] sm:$0xf]
      %v468 = vld [vmem:[%s456 + $0x2c] sm:$0xf]
      %v469 = vld [vmem:[%s456 + $0x30] sm:$0xf]
      %v470 = vld [vmem:[%s456 + $0x34] sm:$0xf]
      %v471 = vld [vmem:[%s456 + $0x38] sm:$0xf]
      %v472 = vld [vmem:[%s456 + $0x3c] sm:$0xf]
      %v473 = vld [vmem:[%s456 + $0x40] sm:$0xf]
      %v474 = vld [vmem:[%s456 + $0x44] sm:$0xf]
      %v478 = vunpack.c.l.b16 %v453
      %v479 = vunpack.c.h.b16 %v453
      %v480 = vunpack.c.l.b16 %v454
      %v481 = vunpack.c.h.b16 %v454
      %v482 = vunpack.c.l.b16 %v455
      %v483 = vunpack.c.h.b16 %v455
      %v484 = vpack.c.b16 %v480, %v478
      %v485 = vpack.c.b16 %v481, %v479
      %v486 = vpack.c.b16 %v482, %v482
      %v487 = vpack.c.b16 %v483, %v483
      %vm488 = vsmask.f32 7424
      %v490 = vshrl.u32 %v484, 16
      %v492 = vshll.u32 %v484, 16
      %v494 = vrot.slane %v492, 1
      %v495 = vor.u32 %v490, %v494
      %v497 = vshll.u32 %v486, 16
      %v499 = vrot.slane %v497, 1
      %v500 = vsel %vm488, %v495, %v499
      %v502 = vshrl.u32 %v485, 16
      %v504 = vshll.u32 %v485, 16
      %v506 = vrot.slane %v504, 1
      %v507 = vor.u32 %v502, %v506
      %v509 = vshll.u32 %v487, 16
      %v511 = vrot.slane %v509, 1
      %v512 = vsel %vm488, %v507, %v511
      %v532 = vunpack.c.l.b16 %v457
      %v533 = vunpack.c.l.b16 %v458
      %v534 = vunpack.c.l.b16 %v459
      %v535 = vunpack.c.l.b16 %v460
      %v536 = vunpack.c.l.b16 %v461
      %v537 = vunpack.c.l.b16 %v462
      %v538 = vunpack.c.l.b16 %v463
      %v539 = vunpack.c.l.b16 %v464
      %v540 = vunpack.c.l.b16 %v465
      %v541 = vunpack.c.l.b16 %v466
      %v542 = vunpack.c.l.b16 %v467
      %v543 = vunpack.c.l.b16 %v468
      %v544 = vunpack.c.l.b16 %v469
      %v545 = vunpack.c.l.b16 %v470
      %v546 = vunpack.c.l.b16 %v471
      %v547 = vunpack.c.l.b16 %v472
      %v548 = vunpack.c.l.b16 %v473
      %v549 = vunpack.c.l.b16 %v474
      %v550 = vpack.c.b16 %v533, %v532
      %v551 = vpack.c.b16 %v535, %v534
      %v552 = vpack.c.b16 %v537, %v536
      %v553 = vpack.c.b16 %v539, %v538
      %v554 = vpack.c.b16 %v541, %v540
      %v555 = vpack.c.b16 %v543, %v542
      %v556 = vpack.c.b16 %v545, %v544
      %v557 = vpack.c.b16 %v547, %v546
      %v558 = vpack.c.b16 %v549, %v548
      %v569 = vsel %vm416, %v512, 0
      %571 = vmatpush.bf16.msra.mxu0 %v557
      %572 = vmatpush.bf16.msra.mxu0 %v556
      %573 = vmatpush.bf16.msra.mxu0 %v555
      %574 = vmatpush.bf16.msra.mxu0 %v554
      %575 = vmatpush.bf16.msra.mxu0 %v553
      %576 = vmatpush.bf16.msra.mxu0 %v552
      %577 = vmatpush.bf16.msra.mxu0 %v551
      %578 = vmatpush.bf16.msra.mxu0 %v550
      %579 = vmatmul.bf16.gmra.mxu0 %v500
      %v580 = vpop.f32.mrf.mxu0
      %v581 = vadd.f32 0.0, %v580
      %v582 = vpop.f32.mrf.mxu0
      %v583 = vadd.f32 0.0, %v582
      %584 = vdwg.mxu0
      %585 = vmatpush.bf16.msra.mxu0 0
      %586 = vmatpush.bf16.msra.mxu0 0
      %587 = vmatpush.bf16.msra.mxu0 0
      %588 = vmatpush.bf16.msra.mxu0 0
      %589 = vmatpush.bf16.msra.mxu0 0
      %590 = vmatpush.bf16.msra.mxu0 0
      %591 = vmatpush.bf16.msra.mxu0 0
      %592 = vmatpush.bf16.msra.mxu0 %v558
      %593 = vmatmul.bf16.gmra.mxu0 %v569
      %v594 = vpop.f32.mrf.mxu0
      %v595 = vadd.f32 %v581, %v594
      %v596 = vpop.f32.mrf.mxu0
      %v597 = vadd.f32 %v583, %v596
      %598 = vdwg.mxu0
      %v599 = vadd.f32 %v451, %v595
      %v600 = vadd.f32 %v452, %v597
      %v601 = vld [vmem:[#allocation2] sm:$0xee]
      %s602 = scalar_lea.vmem %s3, 144
      %v603 = vld [vmem:[%s602] sm:$0xf]
      %v604 = vld [vmem:[%s602 + $0x4] sm:$0xf]
      %v605 = vld [vmem:[%s602 + $0x8] sm:$0xf]
      %v606 = vld [vmem:[%s602 + $0xc] sm:$0xf]
      %v607 = vld [vmem:[%s602 + $0x10] sm:$0xf]
      %v608 = vld [vmem:[%s602 + $0x14] sm:$0xf]
      %v609 = vld [vmem:[%s602 + $0x18] sm:$0xf]
      %v610 = vld [vmem:[%s602 + $0x1c] sm:$0xf]
      %v611 = vld [vmem:[%s602 + $0x20] sm:$0xf]
      %v612 = vld [vmem:[%s602 + $0x24] sm:$0xf]
      %v613 = vld [vmem:[%s602 + $0x28] sm:$0xf]
      %v614 = vld [vmem:[%s602 + $0x2c] sm:$0xf]
      %v615 = vld [vmem:[%s602 + $0x30] sm:$0xf]
      %v616 = vld [vmem:[%s602 + $0x34] sm:$0xf]
      %v617 = vld [vmem:[%s602 + $0x38] sm:$0xf]
      %v618 = vld [vmem:[%s602 + $0x3c] sm:$0xf]
      %v619 = vld [vmem:[%s602 + $0x40] sm:$0xf]
      %v620 = vld [vmem:[%s602 + $0x44] sm:$0xf]
      %v622 = vunpack.c.l.b16 %v601
      %v623 = vunpack.c.h.b16 %v601
      %v624 = vpack.c.b16 %v480, %v622
      %v625 = vpack.c.b16 %v481, %v623
      %vm626 = vcmask 1046528
      %v627 = vrot.slane %v624, 1
      %v628 = vrot.slane %v486, 1
      %v629 = vsel %vm626, %v627, %v628
      %v630 = vrot.slane %v625, 1
      %v631 = vrot.slane %v487, 1
      %v632 = vsel %vm626, %v630, %v631
      %v652 = vunpack.c.l.b16 %v603
      %v653 = vunpack.c.l.b16 %v604
      %v654 = vunpack.c.l.b16 %v605
      %v655 = vunpack.c.l.b16 %v606
      %v656 = vunpack.c.l.b16 %v607
      %v657 = vunpack.c.l.b16 %v608
      %v658 = vunpack.c.l.b16 %v609
      %v659 = vunpack.c.l.b16 %v610
      %v660 = vunpack.c.l.b16 %v611
      %v661 = vunpack.c.l.b16 %v612
      %v662 = vunpack.c.l.b16 %v613
      %v663 = vunpack.c.l.b16 %v614
      %v664 = vunpack.c.l.b16 %v615
      %v665 = vunpack.c.l.b16 %v616
      %v666 = vunpack.c.l.b16 %v617
      %v667 = vunpack.c.l.b16 %v618
      %v668 = vunpack.c.l.b16 %v619
      %v669 = vunpack.c.l.b16 %v620
      %v670 = vpack.c.b16 %v653, %v652
      %v671 = vpack.c.b16 %v655, %v654
      %v672 = vpack.c.b16 %v657, %v656
      %v673 = vpack.c.b16 %v659, %v658
      %v674 = vpack.c.b16 %v661, %v660
      %v675 = vpack.c.b16 %v663, %v662
      %v676 = vpack.c.b16 %v665, %v664
      %v677 = vpack.c.b16 %v667, %v666
      %v678 = vpack.c.b16 %v669, %v668
      %v689 = vsel %vm416, %v632, 0
      %691 = vmatpush.bf16.msra.mxu0 %v677
      %692 = vmatpush.bf16.msra.mxu0 %v676
      %693 = vmatpush.bf16.msra.mxu0 %v675
      %694 = vmatpush.bf16.msra.mxu0 %v674
      %695 = vmatpush.bf16.msra.mxu0 %v673
      %696 = vmatpush.bf16.msra.mxu0 %v672
      %697 = vmatpush.bf16.msra.mxu0 %v671
      %698 = vmatpush.bf16.msra.mxu0 %v670
      %699 = vmatmul.bf16.gmra.mxu0 %v629
      %v700 = vpop.f32.mrf.mxu0
      %v701 = vadd.f32 0.0, %v700
      %v702 = vpop.f32.mrf.mxu0
      %v703 = vadd.f32 0.0, %v702
      %704 = vdwg.mxu0
      %705 = vmatpush.bf16.msra.mxu0 0
      %706 = vmatpush.bf16.msra.mxu0 0
      %707 = vmatpush.bf16.msra.mxu0 0
      %708 = vmatpush.bf16.msra.mxu0 0
      %709 = vmatpush.bf16.msra.mxu0 0
      %710 = vmatpush.bf16.msra.mxu0 0
      %711 = vmatpush.bf16.msra.mxu0 0
      %712 = vmatpush.bf16.msra.mxu0 %v678
      %713 = vmatmul.bf16.gmra.mxu0 %v689
      %v714 = vpop.f32.mrf.mxu0
      %v715 = vadd.f32 %v701, %v714
      %v716 = vpop.f32.mrf.mxu0
      %v717 = vadd.f32 %v703, %v716
      %718 = vdwg.mxu0
      %v719 = vadd.f32 %v599, %v715
      %v720 = vadd.f32 %v600, %v717
      %v721 = vpack.c.bf16 %v719, %v719
      %v722 = vpack.c.bf16 %v720, %v720
      %723 = vst [vmem:[%s258] sm:$0xf] %v721
      %724 = vst [vmem:[%s258 + $0x4] sm:$0xf] %v722
      %v725 = vadd.f32 %v719, %v720
      %v726 = vrot.slane %v725, 4
      %v727 = vadd.f32 %v725, %v726
      %v728 = vrot.slane %v727, 2
      %v729 = vadd.f32 %v727, %v728
      %v730 = vrot.slane %v729, 1
      %v731 = vadd.f32 %v729, %v730
      %v732 = vrcp.pop 16.0
      %v733 = vmul.f32 16.0, %v732
      %v734 = vsub.f32 1.0, %v733
      %v735 = vmul.f32 %v732, %v734
      %v736 = vadd.f32 %v732, %v735
      %vm737 = vweird.f32 %v732
      %v738 = vsel %vm737, %v732, %v736
      %v739 = vmul.f32 %v731, %v738
      %740 = vst [vmem:[%s262] sm:$0x1] %v739
      %v741 = vsub.f32 %v719, %v739
      %v742 = vsub.f32 %v720, %v739
      %v743 = vmul.f32 %v741, %v741
      %v744 = vmul.f32 %v742, %v742
      %v745 = vadd.f32 %v743, %v744
      %v746 = vrot.slane %v745, 4
      %v747 = vadd.f32 %v745, %v746
      %v748 = vrot.slane %v747, 2
      %v749 = vadd.f32 %v747, %v748
      %v750 = vrot.slane %v749, 1
      %v751 = vadd.f32 %v749, %v750
      %752 = vst [vmem:[%s262 + $0x1] sm:$0x1] %v751
      %p753 = scmp.lt.s32.totalorder %s18, 1
      %s754 = scalar_select %p753, %s18, 1
      %s755 = smul.addr %s754, 2
      %s756 = smul.addr %s755, 4
      %s757 = scalar_lea.vmem %s5, %s756
      %p758 = scmp.lt.s32.totalorder %s18, 1
      %s759 = scalar_select %p758, %s18, 1
      %s760 = smul.addr %s759, 2
      %s761 = scalar_lea.vmem %s6, %s760
      // Predicated region
      $region45: #{double_conv2d.3} parent=39 // pred_check
        %p762 = pneg %p146
      $region46: #{double_conv2d.3} parent=39 // pred_check_branch
        %764 = sbr.rel (%p762) target = $region48
      $region47: #{double_conv2d.3} parent=39 // pred_region
        _
      $region48: #{double_conv2d.3} parent=39 // pred_fallthru
        _
      // Predicated region
      $region49: #{double_conv2d.3} parent=39 // pred_check
        %p765 = pneg %p172
      $region50: #{double_conv2d.3} parent=39 // pred_check_branch
        %767 = sbr.rel (%p765) target = $region52
      $region51: #{double_conv2d.3} parent=39 // pred_region
        _
      $region52: #{double_conv2d.3} parent=39 // pred_fallthru
        _
    $region40: #{double_conv2d.3} parent=5 // pred_fallthru
      _
    %p768 = scmp.le.s32.totalorder 2, %s13
    // Predicated region
    $region53: #{double_conv2d.3} parent=5 // pred_check
      %p769 = pneg %p768
    $region54: #{double_conv2d.3} parent=5 // pred_check_branch
      %771 = sbr.rel (%p769) target = $region56
    $region55: #{double_conv2d.3} parent=5 // pred_region
      %s772 = ssub.s32 %s13, 2
      // Predicated region
      $region57: #{double_conv2d.3} parent=55 // pred_check
        %p773 = pneg %p152
      $region58: #{double_conv2d.3} parent=55 // pred_check_branch
        %775 = sbr.rel (%p773) target = $region60
      $region59: #{double_conv2d.3} parent=55 // pred_region
        %p776 = scmp.lt.s32.totalorder %s19, 1
        %s777 = scalar_select %p776, %s19, 1
        %s778 = smul.addr %s777, 2
        %s779 = smul.addr %s778, 4
        %s780 = scalar_lea.vmem %s5, %s779
      $region60: #{double_conv2d.3} parent=55 // pred_fallthru
        _
      // Predicated region
      $region61: #{double_conv2d.3} parent=55 // pred_check
        %p781 = pneg %p178
      $region62: #{double_conv2d.3} parent=55 // pred_check_branch
        %783 = sbr.rel (%p781) target = $region64
      $region63: #{double_conv2d.3} parent=55 // pred_region
        %p784 = scmp.lt.s32.totalorder %s19, 1
        %s785 = scalar_select %p784, %s19, 1
        %s786 = smul.addr %s785, 2
        %s787 = scalar_lea.vmem %s6, %s786
      $region64: #{double_conv2d.3} parent=55 // pred_fallthru
        _
    $region56: #{double_conv2d.3} parent=5 // pred_fallthru
      _
  $region6: #{double_conv2d.3} parent=0 // loop_footer
    %s17 = sadd.s32 1, %s13
  $region7: #{double_conv2d.3} parent=0 // loop_footer_branch
    %12 = sbr.rel target = $region3
  $region8: #{double_conv2d.3} parent=0 // loop_exit
    _

</llo_original>
